<compile_context>
chip_gen: v6e
topology: v6e:2x2x1
jax: 0.10.0
libtpu: 0.0.40
codegen_flags: <defaults>
</compile_context>

<pallas_src>
import jax
import jax.numpy as jnp
import numpy as np
from jax import lax
from jax.experimental import pallas as pl
from jax.experimental.pallas import tpu as pltpu


# ---------------------------------------------------------------------------
# Fused kernel: conv1+bn1+relu -> conv2+bn2 -> +shortcut -> relu, B images/step.
# ---------------------------------------------------------------------------
def basic_block_kernel(x_ref, w1_ref, b1_ref, w2_ref, b2_ref, o_ref):
    # x_ref  : (B, H, W*Cin)      bf16, W folded into lanes, B images per step
    # w1_ref : (3, W*Cin, W*Cout) bf16 block-Toeplitz conv1 weights (BN1 folded)
    # b1_ref : (1, W*Cout)        f32 BN1 bias tiled along W
    # w2_ref : (3, W*Cout, W*Cout) bf16 block-Toeplitz conv2 weights (BN2 folded)
    # b2_ref : (1, W*Cout)        f32 BN2 bias tiled along W
    # o_ref  : (B, H, W*Cout)     f32
    B, H, WCi = x_ref.shape
    WCo = o_ref.shape[2]
    M = B * H

    x_bf = x_ref[...].reshape(M, WCi)            # layout-trivial leading-dim flatten
    x_f32 = x_bf.astype(jnp.float32)             # residual shortcut in f32

    # Per-image boundary-row masks over the flattened (B*H) row axis.
    row_in_img = lax.broadcasted_iota(jnp.int32, (M, WCo), 0) % H
    not_first_row = row_in_img != 0              # top tap invalid at h == 0
    not_last_row = row_in_img != (H - 1)         # bottom tap invalid at h == H-1

    def conv3x3(a_bf, w_ref):
        # 3 lane-dense MXU matmuls on the UNshifted activation; the dy row shift
        # is applied to the f32 partial sums via a sublane roll (XLU) + mask, so
        # the roll wrap-around across image boundaries is zeroed out.
        p_top = jnp.dot(a_bf, w_ref[0], preferred_element_type=jnp.float32)
        p_mid = jnp.dot(a_bf, w_ref[1], preferred_element_type=jnp.float32)
        p_bot = jnp.dot(a_bf, w_ref[2], preferred_element_type=jnp.float32)
        acc = p_mid
        acc = acc + jnp.where(not_first_row,
                              pltpu.roll(p_top, shift=1, axis=0), 0.0)
        acc = acc + jnp.where(not_last_row,
                              pltpu.roll(p_bot, shift=M - 1, axis=0), 0.0)
        return acc

    # ---- stage 1: conv1 + bn1 + relu ---------------------------------------
    y1 = jnp.maximum(conv3x3(x_bf, w1_ref) + b1_ref[...], 0.0)    # (M, W*Cout) f32

    # ---- stage 2: conv2 + bn2 + residual + relu -----------------------------
    acc2 = conv3x3(y1.astype(jnp.bfloat16), w2_ref) + b2_ref[...]
    out = jnp.maximum(acc2 + x_f32, 0.0)                          # identity shortcut
    o_ref[...] = out.reshape(B, H, WCo).astype(o_ref.dtype)


# ---------------------------------------------------------------------------
# Parameter preparation (host side, once): BN fold + block-Toeplitz weights.
# ---------------------------------------------------------------------------
def _build_toeplitz(w_hwio, scale, W):
    """Fold BN scale into the conv weights and lay the 3x3 conv out, per dy-tap,
    as a (W*Cin, W*Cout) block-Toeplitz matrix so the conv over width becomes a
    single lane-dense MXU matmul. SAME-padding in W is encoded by the omitted
    boundary blocks; the H shift is handled in-kernel via roll + mask."""
    kh, kw, Cin, Cout = w_hwio.shape
    wf = w_hwio * scale.reshape(1, 1, 1, Cout)
    t = jnp.zeros((kh, W, Cin, W, Cout), jnp.float32)    # [dy, w_in, ci, w_out, co]
    for dx in range(kw):
        for wo in range(W):
            wi = wo + dx - 1
            if 0 <= wi < W:
                t = t.at[:, wi, :, wo, :].set(wf[:, dx, :, :])
    return t.reshape(kh, W * Cin, W * Cout)


def prepare_block_params(params, W):
    # bf16 weights for the MXU; biases stay f32 for the epilogue.
    t1 = _build_toeplitz(params["w1"], params["bn1_scale"], W).astype(jnp.bfloat16)
    t2 = _build_toeplitz(params["w2"], params["bn2_scale"], W).astype(jnp.bfloat16)
    b1 = jnp.tile(params["bn1_bias"], W).reshape(1, -1).astype(jnp.float32)
    b2 = jnp.tile(params["bn2_bias"], W).reshape(1, -1).astype(jnp.float32)
    return {"t1": t1, "b1": b1, "t2": t2, "b2": b2}


# ---------------------------------------------------------------------------
# Wrapper: consumes / produces the lane-dense (N, H, W*C) layout directly so
# consecutive blocks chain without NCHW<->NHWC transposes.
# ---------------------------------------------------------------------------
def basic_block_forward(x_lane, prepped, *, images_per_step):
    N, H, WCi = x_lane.shape
    WCo = prepped["b1"].shape[1]
    B = images_per_step
    assert N % B == 0, "images_per_step must divide the batch"
    assert (B * H) % 8 == 0, "B*H must be sublane-aligned"
    assert WCi % 128 == 0 and WCo % 128 == 0, "W*C must be a multiple of 128"
    assert WCi == WCo, "identity shortcut requires inplanes == planes (no downsample)"

    return pl.pallas_call(
        basic_block_kernel,
        out_shape=jax.ShapeDtypeStruct((N, H, WCo), jnp.float32),
        grid_spec=pltpu.PrefetchScalarGridSpec(
            num_scalar_prefetch=0,
            grid=(N // B,),
            in_specs=[
                pl.BlockSpec((B, H, WCi), lambda g: (g, 0, 0)),
                pl.BlockSpec((3, WCi, WCo), lambda g: (0, 0, 0)),   # conv1 weights
                pl.BlockSpec((1, WCo), lambda g: (0, 0)),           # bn1 bias
                pl.BlockSpec((3, WCo, WCo), lambda g: (0, 0, 0)),   # conv2 weights
                pl.BlockSpec((1, WCo), lambda g: (0, 0)),           # bn2 bias
            ],
            out_specs=pl.BlockSpec((B, H, WCo), lambda g: (g, 0, 0)),
        ),
        compiler_params=pltpu.CompilerParams(
            dimension_semantics=("parallel",),
            vmem_limit_bytes=32 * 1024 * 1024,
        ),
    )(x_lane, prepped["t1"], prepped["b1"], prepped["t2"], prepped["b2"])


# ---------------------------------------------------------------------------
# Params + pure-JAX reference for correctness.
# ---------------------------------------------------------------------------
def make_params(key, inplanes, planes, eps=1e-5):
    k1, k2, k3, k4, k5, k6 = jax.random.split(key, 6)
    # conv weights in HWIO (3, 3, Cin, Cout), bias=False
    w1 = jax.random.normal(k1, (3, 3, inplanes, planes), jnp.float32) * 0.1
    w2 = jax.random.normal(k2, (3, 3, planes, planes), jnp.float32) * 0.1
    # BN params; running stats at default init (mean=0, var=1), eval-mode fold
    g1 = jax.random.normal(k3, (planes,), jnp.float32) * 0.1 + 1.0
    g2 = jax.random.normal(k4, (planes,), jnp.float32) * 0.1 + 1.0
    be1 = jax.random.normal(k5, (planes,), jnp.float32) * 0.1
    be2 = jax.random.normal(k6, (planes,), jnp.float32) * 0.1
    mean = jnp.zeros((planes,), jnp.float32)
    var = jnp.ones((planes,), jnp.float32)

    def fold(gamma, beta):
        scale = gamma / jnp.sqrt(var + eps)
        bias = beta - mean * scale
        return scale, bias

    s1, bb1 = fold(g1, be1)
    s2, bb2 = fold(g2, be2)
    return {"w1": w1, "w2": w2,
            "bn1_scale": s1, "bn1_bias": bb1,
            "bn2_scale": s2, "bn2_bias": bb2}


def _reference(x_nchw, params):
    x = jnp.transpose(x_nchw, (0, 2, 3, 1))
    dn = ("NHWC", "HWIO", "NHWC")

    def conv_bn(h, w, s, b):
        c = lax.conv_general_dilated(h, w, (1, 1), "SAME", dimension_numbers=dn)
        return c * s.reshape(1, 1, 1, -1) + b.reshape(1, 1, 1, -1)

    y = jax.nn.relu(conv_bn(x, params["w1"], params["bn1_scale"], params["bn1_bias"]))
    y = conv_bn(y, params["w2"], params["bn2_scale"], params["bn2_bias"])
    y = jax.nn.relu(y + x)
    return jnp.transpose(y, (0, 3, 1, 2))


if __name__ == "__main__":
    # BasicBlock(inplanes=8, planes=8, stride=1, downsample=None)
    N, C, H, W = 16, 8, 16, 16          # W*C = 128 -> fully lane-dense blocks
    B = 8                               # images per grid step -> M = B*H = 128
    key = jax.random.PRNGKey(0)
    kx, kp = jax.random.split(key)
    x = jax.random.normal(kx, (N, C, H, W), jnp.float32)     # NCHW (PyTorch conv.)
    params = make_params(kp, inplanes=C, planes=C)
    prepped = prepare_block_params(params, W)

    # One-time layout conversion at the network edge (hoisted out of the block).
    x_lane = jnp.transpose(x, (0, 2, 3, 1)).reshape(N, H, W * C).astype(jnp.bfloat16)

    fwd = jax.jit(lambda xl, p: basic_block_forward(xl, p, images_per_step=B))
    out_lane = jax.block_until_ready(fwd(x_lane, prepped))
    out = jnp.transpose(out_lane.reshape(N, H, W, C), (0, 3, 1, 2))   # -> NCHW

    ref = jax.block_until_ready(_reference(x, params))
    assert out.shape == (N, C, H, W)
    # bf16 matmul inputs with f32 accumulation -> looser tolerance than pure f32.
    np.testing.assert_allclose(np.asarray(out), np.asarray(ref), rtol=3e-2, atol=3e-2)
    print("KERNEL_OK")
</pallas_src>

<mosaic_0001>
module attributes {stable_mosaic.version = 11 : i64} {
  func.func @basic_block_kernel(%arg0: i32, %arg1: memref<8x16x128xbf16, #tpu.memory_space<vmem>>, %arg2: memref<3x128x128xbf16, #tpu.memory_space<vmem>>, %arg3: memref<1x128xf32, #tpu.memory_space<vmem>>, %arg4: memref<3x128x128xbf16, #tpu.memory_space<vmem>>, %arg5: memref<1x128xf32, #tpu.memory_space<vmem>>, %arg6: memref<8x16x128xf32, #tpu.memory_space<vmem>>) attributes {dimension_semantics = [#tpu.dimension_semantics<parallel>], iteration_bounds = array<i64: 2>, scalar_prefetch = 0 : i64, scratch_operands = 0 : i64, tpu.core_type = #tpu.core_type<tc>, window_params = [{transform_indices = @transform_0, window_bounds = array<i64: 8, 16, 128>}, {pipeline_mode = #tpu.pipeline_mode<synchronous>, transform_indices = @transform_1, window_bounds = array<i64: 3, 128, 128>}, {pipeline_mode = #tpu.pipeline_mode<synchronous>, transform_indices = @transform_2, window_bounds = array<i64: 1, 128>}, {pipeline_mode = #tpu.pipeline_mode<synchronous>, transform_indices = @transform_3, window_bounds = array<i64: 3, 128, 128>}, {pipeline_mode = #tpu.pipeline_mode<synchronous>, transform_indices = @transform_4, window_bounds = array<i64: 1, 128>}, {transform_indices = @transform_5, window_bounds = array<i64: 8, 16, 128>}]} {
    %c0 = arith.constant 0 : index
    %c0_0 = arith.constant 0 : index
    %c0_1 = arith.constant 0 : index
    %0 = vector.load %arg1[%c0, %c0_0, %c0_1] : memref<8x16x128xbf16, #tpu.memory_space<vmem>>, vector<8x16x128xbf16>
    %1 = vector.shape_cast %0 : vector<8x16x128xbf16> to vector<128x128xbf16>
    %2 = arith.extf %1 : vector<128x128xbf16> to vector<128x128xf32>
    %3 = tpu.iota {dimensions = array<i32: 0>} : vector<128x128xi32>
    %c16_i32 = arith.constant 16 : i32
    %c0_i32 = arith.constant 0 : i32
    %4 = arith.cmpi eq, %c16_i32, %c0_i32 : i32
    %c1_i32 = arith.constant 1 : i32
    %5 = arith.select %4, %c1_i32, %c16_i32 : i32
    %6 = vector.broadcast %5 : i32 to vector<128x128xi32>
    %7 = arith.remsi %3, %6 : vector<128x128xi32>
    %c0_i32_2 = arith.constant 0 : i32
    %8 = vector.broadcast %c0_i32_2 : i32 to vector<128x128xi32>
    %9 = arith.cmpi ne, %7, %8 : vector<128x128xi32>
    %c0_i32_3 = arith.constant 0 : i32
    %10 = vector.broadcast %c0_i32_3 : i32 to vector<128x128xi32>
    %11 = arith.cmpi slt, %7, %10 : vector<128x128xi32>
    %c0_i32_4 = arith.constant 0 : i32
    %12 = arith.cmpi slt, %5, %c0_i32_4 : i32
    %13 = vector.broadcast %12 : i1 to vector<128x128xi1>
    %14 = vector.broadcast %13 : vector<128x128xi1> to vector<128x128xi1>
    %15 = arith.xori %11, %14 : vector<128x128xi1>
    %16 = arith.andi %15, %9 : vector<128x128xi1>
    %17 = vector.broadcast %5 : i32 to vector<128x128xi32>
    %18 = arith.addi %7, %17 : vector<128x128xi32>
    %19 = arith.select %16, %18, %7 : vector<128x128xi1>, vector<128x128xi32>
    %c0_i32_5 = arith.constant 0 : i32
    %20 = vector.broadcast %c0_i32_5 : i32 to vector<128x128xi32>
    %21 = arith.cmpi ne, %19, %20 : vector<128x128xi32>
    %c15_i32 = arith.constant 15 : i32
    %22 = vector.broadcast %c15_i32 : i32 to vector<128x128xi32>
    %23 = arith.cmpi ne, %19, %22 : vector<128x128xi32>
    %c0_6 = arith.constant 0 : index
    %c0_7 = arith.constant 0 : index
    %c0_8 = arith.constant 0 : index
    %24 = vector.load %arg2[%c0_6, %c0_7, %c0_8] : memref<3x128x128xbf16, #tpu.memory_space<vmem>>, vector<1x128x128xbf16>
    %25 = vector.shape_cast %24 : vector<1x128x128xbf16> to vector<128x128xbf16>
    %cst = arith.constant dense<0.000000e+00> : vector<128x128xf32>
    %26 = tpu.matmul %1, %25, %cst {dimension_numbers = #tpu.dot_dimension_numbers<[1], [0], [0], [1], [0, 0, 1, 1], [], []>} : vector<128x128xbf16>, vector<128x128xbf16>, vector<128x128xf32> -> vector<128x128xf32>
    %c1 = arith.constant 1 : index
    %c0_9 = arith.constant 0 : index
    %c0_10 = arith.constant 0 : index
    %27 = vector.load %arg2[%c1, %c0_9, %c0_10] : memref<3x128x128xbf16, #tpu.memory_space<vmem>>, vector<1x128x128xbf16>
    %28 = vector.shape_cast %27 : vector<1x128x128xbf16> to vector<128x128xbf16>
    %cst_11 = arith.constant dense<0.000000e+00> : vector<128x128xf32>
    %29 = tpu.matmul %1, %28, %cst_11 {dimension_numbers = #tpu.dot_dimension_numbers<[1], [0], [0], [1], [0, 0, 1, 1], [], []>} : vector<128x128xbf16>, vector<128x128xbf16>, vector<128x128xf32> -> vector<128x128xf32>
    %c2 = arith.constant 2 : index
    %c0_12 = arith.constant 0 : index
    %c0_13 = arith.constant 0 : index
    %30 = vector.load %arg2[%c2, %c0_12, %c0_13] : memref<3x128x128xbf16, #tpu.memory_space<vmem>>, vector<1x128x128xbf16>
    %31 = vector.shape_cast %30 : vector<1x128x128xbf16> to vector<128x128xbf16>
    %cst_14 = arith.constant dense<0.000000e+00> : vector<128x128xf32>
    %32 = tpu.matmul %1, %31, %cst_14 {dimension_numbers = #tpu.dot_dimension_numbers<[1], [0], [0], [1], [0, 0, 1, 1], [], []>} : vector<128x128xbf16>, vector<128x128xbf16>, vector<128x128xf32> -> vector<128x128xf32>
    %c1_i32_15 = arith.constant 1 : i32
    %33 = tpu.dynamic_rotate %26 by %c1_i32_15 dim 0 : vector<128x128xf32>, i32 -> vector<128x128xf32>
    %cst_16 = arith.constant 0.000000e+00 : f32
    %34 = vector.broadcast %cst_16 : f32 to vector<128x128xf32>
    %35 = arith.select %21, %33, %34 : vector<128x128xi1>, vector<128x128xf32>
    %36 = arith.addf %29, %35 : vector<128x128xf32>
    %c127_i32 = arith.constant 127 : i32
    %37 = tpu.dynamic_rotate %32 by %c127_i32 dim 0 : vector<128x128xf32>, i32 -> vector<128x128xf32>
    %cst_17 = arith.constant 0.000000e+00 : f32
    %38 = vector.broadcast %cst_17 : f32 to vector<128x128xf32>
    %39 = arith.select %23, %37, %38 : vector<128x128xi1>, vector<128x128xf32>
    %40 = arith.addf %36, %39 : vector<128x128xf32>
    %c0_18 = arith.constant 0 : index
    %c0_19 = arith.constant 0 : index
    %41 = vector.load %arg3[%c0_18, %c0_19] : memref<1x128xf32, #tpu.memory_space<vmem>>, vector<1x128xf32>
    %42 = vector.broadcast %41 : vector<1x128xf32> to vector<128x128xf32>
    %43 = arith.addf %40, %42 : vector<128x128xf32>
    %cst_20 = arith.constant 0.000000e+00 : f32
    %44 = vector.broadcast %cst_20 : f32 to vector<128x128xf32>
    %45 = arith.maximumf %43, %44 : vector<128x128xf32>
    %46 = arith.truncf %45 : vector<128x128xf32> to vector<128x128xbf16>
    %c0_21 = arith.constant 0 : index
    %c0_22 = arith.constant 0 : index
    %c0_23 = arith.constant 0 : index
    %47 = vector.load %arg4[%c0_21, %c0_22, %c0_23] : memref<3x128x128xbf16, #tpu.memory_space<vmem>>, vector<1x128x128xbf16>
    %48 = vector.shape_cast %47 : vector<1x128x128xbf16> to vector<128x128xbf16>
    %cst_24 = arith.constant dense<0.000000e+00> : vector<128x128xf32>
    %49 = tpu.matmul %46, %48, %cst_24 {dimension_numbers = #tpu.dot_dimension_numbers<[1], [0], [0], [1], [0, 0, 1, 1], [], []>} : vector<128x128xbf16>, vector<128x128xbf16>, vector<128x128xf32> -> vector<128x128xf32>
    %c1_25 = arith.constant 1 : index
    %c0_26 = arith.constant 0 : index
    %c0_27 = arith.constant 0 : index
    %50 = vector.load %arg4[%c1_25, %c0_26, %c0_27] : memref<3x128x128xbf16, #tpu.memory_space<vmem>>, vector<1x128x128xbf16>
    %51 = vector.shape_cast %50 : vector<1x128x128xbf16> to vector<128x128xbf16>
    %cst_28 = arith.constant dense<0.000000e+00> : vector<128x128xf32>
    %52 = tpu.matmul %46, %51, %cst_28 {dimension_numbers = #tpu.dot_dimension_numbers<[1], [0], [0], [1], [0, 0, 1, 1], [], []>} : vector<128x128xbf16>, vector<128x128xbf16>, vector<128x128xf32> -> vector<128x128xf32>
    %c2_29 = arith.constant 2 : index
    %c0_30 = arith.constant 0 : index
    %c0_31 = arith.constant 0 : index
    %53 = vector.load %arg4[%c2_29, %c0_30, %c0_31] : memref<3x128x128xbf16, #tpu.memory_space<vmem>>, vector<1x128x128xbf16>
    %54 = vector.shape_cast %53 : vector<1x128x128xbf16> to vector<128x128xbf16>
    %cst_32 = arith.constant dense<0.000000e+00> : vector<128x128xf32>
    %55 = tpu.matmul %46, %54, %cst_32 {dimension_numbers = #tpu.dot_dimension_numbers<[1], [0], [0], [1], [0, 0, 1, 1], [], []>} : vector<128x128xbf16>, vector<128x128xbf16>, vector<128x128xf32> -> vector<128x128xf32>
    %c1_i32_33 = arith.constant 1 : i32
    %56 = tpu.dynamic_rotate %49 by %c1_i32_33 dim 0 : vector<128x128xf32>, i32 -> vector<128x128xf32>
    %cst_34 = arith.constant 0.000000e+00 : f32
    %57 = vector.broadcast %cst_34 : f32 to vector<128x128xf32>
    %58 = arith.select %21, %56, %57 : vector<128x128xi1>, vector<128x128xf32>
    %59 = arith.addf %52, %58 : vector<128x128xf32>
    %c127_i32_35 = arith.constant 127 : i32
    %60 = tpu.dynamic_rotate %55 by %c127_i32_35 dim 0 : vector<128x128xf32>, i32 -> vector<128x128xf32>
    %cst_36 = arith.constant 0.000000e+00 : f32
    %61 = vector.broadcast %cst_36 : f32 to vector<128x128xf32>
    %62 = arith.select %23, %60, %61 : vector<128x128xi1>, vector<128x128xf32>
    %63 = arith.addf %59, %62 : vector<128x128xf32>
    %c0_37 = arith.constant 0 : index
    %c0_38 = arith.constant 0 : index
    %64 = vector.load %arg5[%c0_37, %c0_38] : memref<1x128xf32, #tpu.memory_space<vmem>>, vector<1x128xf32>
    %65 = vector.broadcast %64 : vector<1x128xf32> to vector<128x128xf32>
    %66 = arith.addf %63, %65 : vector<128x128xf32>
    %67 = arith.addf %66, %2 : vector<128x128xf32>
    %cst_39 = arith.constant 0.000000e+00 : f32
    %68 = vector.broadcast %cst_39 : f32 to vector<128x128xf32>
    %69 = arith.maximumf %67, %68 : vector<128x128xf32>
    %70 = vector.shape_cast %69 : vector<128x128xf32> to vector<8x16x128xf32>
    %c0_40 = arith.constant 0 : index
    %c0_41 = arith.constant 0 : index
    %c0_42 = arith.constant 0 : index
    %71 = vector.load %arg6[%c0_40, %c0_41, %c0_42] : memref<8x16x128xf32, #tpu.memory_space<vmem>>, vector<8x16x128xf32>
    tpu.vector_store %arg6[%c0_40, %c0_41, %c0_42], %70 {strides = array<i32>} : memref<8x16x128xf32, #tpu.memory_space<vmem>>, vector<8x16x128xf32>,
    return
  }
  func.func @transform_0(%arg0: i32) -> (i32, i32, i32) {
    %c0_i32 = arith.constant 0 : i32
    %c0_i32_0 = arith.constant 0 : i32
    %c0_i32_1 = arith.constant 0 : i32
    return %arg0, %c0_i32, %c0_i32_0 : i32, i32, i32
  }
  func.func @transform_1(%arg0: i32) -> (i32, i32, i32) {
    %c0_i32 = arith.constant 0 : i32
    %c0_i32_0 = arith.constant 0 : i32
    %c0_i32_1 = arith.constant 0 : i32
    %c0_i32_2 = arith.constant 0 : i32
    return %c0_i32, %c0_i32_0, %c0_i32_1 : i32, i32, i32
  }
  func.func @transform_2(%arg0: i32) -> (i32, i32) {
    %c0_i32 = arith.constant 0 : i32
    %c0_i32_0 = arith.constant 0 : i32
    %c0_i32_1 = arith.constant 0 : i32
    return %c0_i32, %c0_i32_0 : i32, i32
  }
  func.func @transform_3(%arg0: i32) -> (i32, i32, i32) {
    %c0_i32 = arith.constant 0 : i32
    %c0_i32_0 = arith.constant 0 : i32
    %c0_i32_1 = arith.constant 0 : i32
    %c0_i32_2 = arith.constant 0 : i32
    return %c0_i32, %c0_i32_0, %c0_i32_1 : i32, i32, i32
  }
  func.func @transform_4(%arg0: i32) -> (i32, i32) {
    %c0_i32 = arith.constant 0 : i32
    %c0_i32_0 = arith.constant 0 : i32
    %c0_i32_1 = arith.constant 0 : i32
    return %c0_i32, %c0_i32_0 : i32, i32
  }
  func.func @transform_5(%arg0: i32) -> (i32, i32, i32) {
    %c0_i32 = arith.constant 0 : i32
    %c0_i32_0 = arith.constant 0 : i32
    %c0_i32_1 = arith.constant 0 : i32
    return %arg0, %c0_i32, %c0_i32_0 : i32, i32, i32
  }
}

</mosaic_0001>

<llo_original>
// kernel: _lambda_.1
$region0: #{_lambda_.1}
  #allocation0 [shape = 'u32[]', space=smem, size = 0x4, offset = 0x4, fixed_abs, tag = 'smem constant byte address 0x4 - core index']
  #allocation1 [shape = 'u32[144,128]{1,0:T(1,128)}', space=vmem, size = 0x12000, scoped, tag = 'internal scratch']
  %s0 = inlined_call_operand.hbm [shape: bf16[16,16,128], index: 0, kind: input, shape index: {}]
  %s1 = inlined_call_operand.hbm [shape: bf16[3,128,128], index: 1, kind: input, shape index: {}]
  %s2 = inlined_call_operand.vmem [shape: f32[1,128], index: 2, kind: input, shape index: {}]
  %s3 = inlined_call_operand.hbm [shape: bf16[3,128,128], index: 3, kind: input, shape index: {}]
  %s4 = inlined_call_operand.vmem [shape: f32[1,128], index: 4, kind: input, shape index: {}]
  %s5 = inlined_call_operand.hbm [shape: f32[16,16,128], index: 5, kind: output, shape index: {}]
  %s6 = sld [smem:[#allocation0]]
  $region65: #{_lambda_.1} parent=0
    _
  %s8 = ssub.s32 1, %s6
  %s9 = scalar_select 0, %s8, %s6
  $region1: #{_lambda_.1} parent=0
    #allocation2 [shape = 'u8[65536]{0}', space=vmem, size = 0x10000, scoped, tag = 'input window, operand 0']
    #allocation3 [shape = 's32[2]{0}', space=sflag, size = 0x8, scoped, tag = 'scoped memory for _lambda_.1']
    #allocation4 [shape = 's32[2]{0}', space=sflag, size = 0x8, scoped, tag = 'scoped memory for _lambda_.1']
    #allocation5 [shape = 'u8[98304]{0}', space=vmem, size = 0x18000, scoped, tag = 'input window, operand 1, single buffered']
    #allocation6 [shape = 's32[1]{0}', space=sflag, size = 0x4, scoped, tag = 'scoped memory for _lambda_.1']
    #allocation7 [shape = 'u8[98304]{0}', space=vmem, size = 0x18000, scoped, tag = 'input window, operand 3, single buffered']
    #allocation8 [shape = 'u8[131072]{0}', space=vmem, size = 0x20000, scoped, tag = 'output window, operand 0']
    %10 = vsyncpa [#allocation3], 0
    %s11 = scalar_lea.sflag [#allocation3], 1
    %12 = vsyncpa %s11, 0
    %13 = vsyncpa [#allocation6], 0
    %14 = vsyncpa [#allocation4], 0
    %s15 = scalar_lea.sflag [#allocation4], 1
    %16 = vsyncpa %s15, 0
    loop: start=0, step=1, limit=4
    $region2: #{_lambda_.1} parent=1 // loop_pre_header
      _
    $region3: #{_lambda_.1} parent=1 // loop_header
      %s18 = sphi 0, %s22
      %p19 = scmp.ge.s32.totalorder %s18, 4
      %s28 = sphi 0, %s30
      %s31 = sphi 0, %s28
      %s32 = sphi 0, %s31
      %s48 = sphi 0, %s32
      %s52 = sphi 0, %s52
      %s54 = sphi 0, %s52
      %s55 = sphi 0, %s54
      %s69 = sphi 0, %s55
      %s73 = sphi 0, %s73
      %s75 = sphi 0, %s73
      %s76 = sphi 0, %s75
      %s90 = sphi 0, %s76
      %s94 = sphi 0, %s94
      %s96 = sphi 0, %s94
      %s97 = sphi 0, %s96
      %s111 = sphi 0, %s97
      %s115 = sphi 0, %s115
      %s117 = sphi 0, %s115
      %s118 = sphi 0, %s117
      %s132 = sphi 0, %s118
      %s138 = sphi 0, %s140
      %s141 = sphi 0, %s138
      %s142 = sphi 0, %s141
      %s158 = sphi 0, %s142
    $region4: #{_lambda_.1} parent=1 // loop_header_branch
      %21 = sbr.rel (%p19) target = $region8
    $region5: #{_lambda_.1} parent=1 // loop_body
      %s23 = ssub.s32 %s18, 1
      %s24 = ssub.s32 %s18, 2
      %s25 = sadd.s32 %s18, 1
      %s26 = ssub.s32 %s18, %s25
      %p27 = scmp.eq.s32.totalorder %s26, 0
      %s29 = sadd.s32 %s28, 1
      %s30 = scalar_select %p27, %s28, %s29
      %p33 = pneg %p27
      %p34 = scmp.eq.s32.totalorder %s18, 1
      %p35 = por %p33, %p34
      %p36 = scmp.ne.s32.totalorder %s28, %s31
      %p37 = scmp.eq.s32.totalorder %s18, 0
      %p38 = por %p36, %p37
      %p39 = scmp.ne.s32.totalorder %s28, %s31
      %p40 = scmp.eq.s32.totalorder %s23, 1
      %p41 = por %p39, %p40
      %p42 = scmp.ne.s32.totalorder %s31, %s32
      %p43 = scmp.eq.s32.totalorder %s23, 0
      %p44 = por %p42, %p43
      %p45 = scmp.ne.s32.totalorder %s31, %s32
      %p46 = scmp.eq.s32.totalorder %s24, 1
      %p47 = por %p45, %p46
      %p49 = scmp.ne.s32.totalorder %s32, %s48
      %p50 = scmp.eq.s32.totalorder %s24, 0
      %p51 = por %p49, %p50
      %s53 = sadd.s32 %s52, 1
      %p56 = scmp.eq.s32.totalorder %s18, 1
      %p57 = scmp.ne.s32.totalorder %s52, %s54
      %p58 = scmp.eq.s32.totalorder %s18, 0
      %p59 = por %p57, %p58
      %p60 = scmp.ne.s32.totalorder %s52, %s54
      %p61 = scmp.eq.s32.totalorder %s23, 1
      %p62 = por %p60, %p61
      %p63 = scmp.ne.s32.totalorder %s54, %s55
      %p64 = scmp.eq.s32.totalorder %s23, 0
      %p65 = por %p63, %p64
      %p66 = scmp.ne.s32.totalorder %s54, %s55
      %p67 = scmp.eq.s32.totalorder %s24, 1
      %p68 = por %p66, %p67
      %p70 = scmp.ne.s32.totalorder %s55, %s69
      %p71 = scmp.eq.s32.totalorder %s24, 0
      %p72 = por %p70, %p71
      %s74 = sadd.s32 %s73, 1
      %p77 = scmp.eq.s32.totalorder %s18, 1
      %p78 = scmp.ne.s32.totalorder %s73, %s75
      %p79 = scmp.eq.s32.totalorder %s18, 0
      %p80 = por %p78, %p79
      %p81 = scmp.ne.s32.totalorder %s73, %s75
      %p82 = scmp.eq.s32.totalorder %s23, 1
      %p83 = por %p81, %p82
      %p84 = scmp.ne.s32.totalorder %s75, %s76
      %p85 = scmp.eq.s32.totalorder %s23, 0
      %p86 = por %p84, %p85
      %p87 = scmp.ne.s32.totalorder %s75, %s76
      %p88 = scmp.eq.s32.totalorder %s24, 1
      %p89 = por %p87, %p88
      %p91 = scmp.ne.s32.totalorder %s76, %s90
      %p92 = scmp.eq.s32.totalorder %s24, 0
      %p93 = por %p91, %p92
      %s95 = sadd.s32 %s94, 1
      %p98 = scmp.eq.s32.totalorder %s18, 1
      %p99 = scmp.ne.s32.totalorder %s94, %s96
      %p100 = scmp.eq.s32.totalorder %s18, 0
      %p101 = por %p99, %p100
      %p102 = scmp.ne.s32.totalorder %s94, %s96
      %p103 = scmp.eq.s32.totalorder %s23, 1
      %p104 = por %p102, %p103
      %p105 = scmp.ne.s32.totalorder %s96, %s97
      %p106 = scmp.eq.s32.totalorder %s23, 0
      %p107 = por %p105, %p106
      %p108 = scmp.ne.s32.totalorder %s96, %s97
      %p109 = scmp.eq.s32.totalorder %s24, 1
      %p110 = por %p108, %p109
      %p112 = scmp.ne.s32.totalorder %s97, %s111
      %p113 = scmp.eq.s32.totalorder %s24, 0
      %p114 = por %p112, %p113
      %s116 = sadd.s32 %s115, 1
      %p119 = scmp.eq.s32.totalorder %s18, 1
      %p120 = scmp.ne.s32.totalorder %s115, %s117
      %p121 = scmp.eq.s32.totalorder %s18, 0
      %p122 = por %p120, %p121
      %p123 = scmp.ne.s32.totalorder %s115, %s117
      %p124 = scmp.eq.s32.totalorder %s23, 1
      %p125 = por %p123, %p124
      %p126 = scmp.ne.s32.totalorder %s117, %s118
      %p127 = scmp.eq.s32.totalorder %s23, 0
      %p128 = por %p126, %p127
      %p129 = scmp.ne.s32.totalorder %s117, %s118
      %p130 = scmp.eq.s32.totalorder %s24, 1
      %p131 = por %p129, %p130
      %p133 = scmp.ne.s32.totalorder %s118, %s132
      %p134 = scmp.eq.s32.totalorder %s24, 0
      %p135 = por %p133, %p134
      %s136 = ssub.s32 %s18, %s25
      %p137 = scmp.eq.s32.totalorder %s136, 0
      %s139 = sadd.s32 %s138, 1
      %s140 = scalar_select %p137, %s138, %s139
      %p143 = pneg %p137
      %p144 = scmp.eq.s32.totalorder %s18, 1
      %p145 = por %p143, %p144
      %p146 = scmp.ne.s32.totalorder %s138, %s141
      %p147 = scmp.eq.s32.totalorder %s18, 0
      %p148 = por %p146, %p147
      %p149 = scmp.ne.s32.totalorder %s138, %s141
      %p150 = scmp.eq.s32.totalorder %s23, 1
      %p151 = por %p149, %p150
      %p152 = scmp.ne.s32.totalorder %s141, %s142
      %p153 = scmp.eq.s32.totalorder %s23, 0
      %p154 = por %p152, %p153
      %p155 = scmp.ne.s32.totalorder %s141, %s142
      %p156 = scmp.eq.s32.totalorder %s24, 1
      %p157 = por %p155, %p156
      %p159 = scmp.ne.s32.totalorder %s142, %s158
      %p160 = scmp.eq.s32.totalorder %s24, 0
      %p161 = por %p159, %p160
      %p162 = scmp.le.s32.totalorder 1, %s18
      %p163 = scmp.lt.s32.totalorder %s18, 3
      %p164 = pnand %p162, %p163
      %p165 = pneg %p164
      // Predicated region
      $region9: #{_lambda_.1} parent=5 // pred_check
        _
      $region10: #{_lambda_.1} parent=5 // pred_check_branch
        %167 = sbr.rel (%p164) target = $region12
      $region11: #{_lambda_.1} parent=5 // pred_region
        %s168 = ssub.s32 %s18, 1
        // Predicated region
        $region13: #{_lambda_.1} parent=11 // pred_check
          %p169 = pneg %p65
        $region14: #{_lambda_.1} parent=11 // pred_check_branch
          %171 = sbr.rel (%p169) target = $region16
        $region15: #{_lambda_.1} parent=11 // pred_region
          %s173 = ssub.s32 3072, 3072
          %174 = vsyncadd [#allocation6], %s173
          %s175 = sshll.u32 [#allocation5], 4
          %s176 = int_to_ptr.vmem [resolvable:$true] %s175
          %181 = dma.hbm_to_vmem [thread:$0]  %s1, 3072, %s176, [#allocation6], 64, 64, 4
        $region16: #{_lambda_.1} parent=11 // pred_fallthru
          _
        // Predicated region
        $region17: #{_lambda_.1} parent=11 // pred_check
          %p182 = pneg %p86
        $region18: #{_lambda_.1} parent=11 // pred_check_branch
          %184 = sbr.rel (%p182) target = $region20
        $region19: #{_lambda_.1} parent=11 // pred_region
          _
        $region20: #{_lambda_.1} parent=11 // pred_fallthru
          _
        // Predicated region
        $region21: #{_lambda_.1} parent=11 // pred_check
          %p185 = pneg %p107
        $region22: #{_lambda_.1} parent=11 // pred_check_branch
          %187 = sbr.rel (%p185) target = $region24
        $region23: #{_lambda_.1} parent=11 // pred_region
          %s189 = ssub.s32 3072, 3072
          %190 = vsyncadd [#allocation6], %s189
          %s191 = sshll.u32 [#allocation7], 4
          %s192 = int_to_ptr.vmem [resolvable:$true] %s191
          %197 = dma.hbm_to_vmem [thread:$0]  %s3, 3072, %s192, [#allocation6], 64, 64, 4
        $region24: #{_lambda_.1} parent=11 // pred_fallthru
          _
        // Predicated region
        $region25: #{_lambda_.1} parent=11 // pred_check
          %p198 = pneg %p128
        $region26: #{_lambda_.1} parent=11 // pred_check_branch
          %200 = sbr.rel (%p198) target = $region28
        $region27: #{_lambda_.1} parent=11 // pred_region
          _
        $region28: #{_lambda_.1} parent=11 // pred_fallthru
          _
      $region12: #{_lambda_.1} parent=5 // pred_fallthru
        _
      %p201 = scmp.lt.s32.totalorder %s18, 2
      // Predicated region
      $region29: #{_lambda_.1} parent=5 // pred_check
        %p202 = pneg %p201
      $region30: #{_lambda_.1} parent=5 // pred_check_branch
        %204 = sbr.rel (%p202) target = $region32
      $region31: #{_lambda_.1} parent=5 // pred_region
        // Predicated region
        $region33: #{_lambda_.1} parent=31 // pred_check
          %p205 = pneg %p38
        $region34: #{_lambda_.1} parent=31 // pred_check_branch
          %207 = sbr.rel (%p205) target = $region36
        $region35: #{_lambda_.1} parent=31 // pred_region
          %s208 = sand.u32 %s28, 1
          %s209 = scalar_lea.sflag [#allocation3], %s208
          %s210 = sand.u32 %s28, 1
          %s211 = smul.addr %s210, 64
          %s212 = scalar_lea.vmem [#allocation2], %s211
          %s213 = smul.u32 8, %s18
          %s215 = ssub.s32 1024, 1024
          %216 = vsyncadd %s209, %s215
          %s217 = smul.addr %s213, 2
          %s218 = smul.addr %s217, 64
          %s219 = scalar_lea.hbm %s0, %s218
          %s220 = sshll.u32 %s212, 4
          %s221 = int_to_ptr.vmem [resolvable:$true] %s220
          %226 = dma.hbm_to_vmem [thread:$0]  %s219, 1024, %s221, %s209, 64, 64, 4
        $region36: #{_lambda_.1} parent=31 // pred_fallthru
          _
      $region32: #{_lambda_.1} parent=5 // pred_fallthru
        _
      %p227 = scmp.le.s32.totalorder 1, %s18
      %p228 = scmp.lt.s32.totalorder %s18, 3
      %p229 = pnand %p227, %p228
      %p230 = pneg %p229
      // Predicated region
      $region37: #{_lambda_.1} parent=5 // pred_check
        _
      $region38: #{_lambda_.1} parent=5 // pred_check_branch
        %232 = sbr.rel (%p229) target = $region40
      $region39: #{_lambda_.1} parent=5 // pred_region
        %s233 = ssub.s32 %s18, 1
        %s234 = sand.u32 %s31, 1
        %s235 = scalar_lea.sflag [#allocation3], %s234
        %s236 = sand.u32 %s31, 1
        %s237 = smul.addr %s236, 64
        %s238 = scalar_lea.vmem [#allocation2], %s237
        // Predicated region
        $region41: #{_lambda_.1} parent=39 // pred_check
          %p239 = pneg %p44
        $region42: #{_lambda_.1} parent=39 // pred_check_branch
          %241 = sbr.rel (%p239) target = $region44
        $region43: #{_lambda_.1} parent=39 // pred_region
          %242 = dma.done %s235, 1024
        $region44: #{_lambda_.1} parent=39 // pred_fallthru
          _
        // Predicated region
        $region45: #{_lambda_.1} parent=39 // pred_check
          %p243 = pneg %p65
        $region46: #{_lambda_.1} parent=39 // pred_check_branch
          %245 = sbr.rel (%p243) target = $region48
        $region47: #{_lambda_.1} parent=39 // pred_region
          %246 = dma.done [#allocation6], 3072
        $region48: #{_lambda_.1} parent=39 // pred_fallthru
          _
        // Predicated region
        $region49: #{_lambda_.1} parent=39 // pred_check
          %p247 = pneg %p107
        $region50: #{_lambda_.1} parent=39 // pred_check_branch
          %249 = sbr.rel (%p247) target = $region52
        $region51: #{_lambda_.1} parent=39 // pred_region
          %250 = dma.done [#allocation6], 3072
        $region52: #{_lambda_.1} parent=39 // pred_fallthru
          _
        %s251 = sand.u32 %s31, 1
        %s252 = scalar_lea.sflag [#allocation3], %s251
        %s253 = sand.u32 %s31, 1
        %s254 = smul.addr %s253, 64
        %s255 = scalar_lea.vmem [#allocation2], %s254
        %p256 = pneg %p44
        %p257 = pneg %p41
        %p258 = pneg %p65
        %p259 = pneg %p62
        %p260 = pneg %p86
        %p261 = pneg %p83
        %p262 = pneg %p107
        %p263 = pneg %p104
        %p264 = pneg %p128
        %p265 = pneg %p125
        %p266 = pneg %p154
        %p267 = pneg %p151
        %s268 = sand.u32 %s141, 1
        %s269 = scalar_lea.sflag [#allocation4], %s268
        %s270 = sand.u32 %s141, 1
        %s271 = smul.addr %s270, 128
        %s272 = scalar_lea.vmem [#allocation8], %s271
        %s273 = smul.u32 8, %s23
        %s274 = smul.u32 8, %s23
        %v276 = vld [vmem:[%s238] sm:$0xf]
        %v277 = vld [vmem:[%s238 + $0x4] sm:$0xf]
        %v278 = vld [vmem:[%s238 + $0x8] sm:$0xf]
        %v279 = vld [vmem:[%s238 + $0xc] sm:$0xf]
        %v280 = vld [vmem:[%s238 + $0x10] sm:$0xf]
        %v281 = vld [vmem:[%s238 + $0x14] sm:$0xf]
        %v282 = vld [vmem:[%s238 + $0x18] sm:$0xf]
        %v283 = vld [vmem:[%s238 + $0x1c] sm:$0xf]
        %v284 = vld [vmem:[%s238 + $0x20] sm:$0xf]
        %v285 = vld [vmem:[%s238 + $0x24] sm:$0xf]
        %v286 = vld [vmem:[%s238 + $0x28] sm:$0xf]
        %v287 = vld [vmem:[%s238 + $0x2c] sm:$0xf]
        %v288 = vld [vmem:[%s238 + $0x30] sm:$0xf]
        %v289 = vld [vmem:[%s238 + $0x34] sm:$0xf]
        %v290 = vld [vmem:[%s238 + $0x38] sm:$0xf]
        %v291 = vld [vmem:[%s238 + $0x3c] sm:$0xf]
        %v292 = vunpack.c.l.bf16 %v276
        %v293 = vunpack.c.l.bf16 %v277
        %v294 = vunpack.c.l.bf16 %v278
        %v295 = vunpack.c.l.bf16 %v279
        %v296 = vunpack.c.l.bf16 %v280
        %v297 = vunpack.c.l.bf16 %v281
        %v298 = vunpack.c.l.bf16 %v282
        %v299 = vunpack.c.l.bf16 %v283
        %v300 = vunpack.c.l.bf16 %v284
        %v301 = vunpack.c.l.bf16 %v285
        %v302 = vunpack.c.l.bf16 %v286
        %v303 = vunpack.c.l.bf16 %v287
        %v304 = vunpack.c.l.bf16 %v288
        %v305 = vunpack.c.l.bf16 %v289
        %v306 = vunpack.c.l.bf16 %v290
        %v307 = vunpack.c.l.bf16 %v291
        %v308 = vlaneseq
        %v309 = vshrl.u32 %v308, 7
        %v310 = vadd.s32 %v309, 8
        %v311 = vadd.s32 %v309, 16
        %v312 = vadd.s32 %v309, 24
        %v313 = vadd.s32 %v309, 32
        %v314 = vadd.s32 %v309, 40
        %v315 = vadd.s32 %v309, 48
        %v316 = vadd.s32 %v309, 56
        %v317 = vadd.s32 %v309, 64
        %v318 = vadd.s32 %v309, 72
        %v319 = vadd.s32 %v309, 80
        %v320 = vadd.s32 %v309, 88
        %v321 = vadd.s32 %v309, 96
        %v322 = vadd.s32 %v309, 104
        %v323 = vadd.s32 %v309, 112
        %v324 = vadd.s32 %v309, 120
        %vm325 = vcmp.lt.s32.totalorder %v309, 0
        %v326 = vsub.s32 0, %v309
        %v327 = vsel %vm325, %v326, %v309
        %v328 = vshrl.u32 %v327, 4
        %v329 = vand.u32 %v327, 15
        %v330 = vsub.s32 0, %v329
        %v331 = vsel %vm325, %v330, %v329
        %vm332 = vcmp.lt.s32.totalorder %v310, 0
        %v333 = vsub.s32 0, %v310
        %v334 = vsel %vm332, %v333, %v310
        %v335 = vshrl.u32 %v334, 4
        %v336 = vand.u32 %v334, 15
        %v337 = vsub.s32 0, %v336
        %v338 = vsel %vm332, %v337, %v336
        %vm339 = vcmp.lt.s32.totalorder %v311, 0
        %v340 = vsub.s32 0, %v311
        %v341 = vsel %vm339, %v340, %v311
        %v342 = vshrl.u32 %v341, 4
        %v343 = vand.u32 %v341, 15
        %v344 = vsub.s32 0, %v343
        %v345 = vsel %vm339, %v344, %v343
        %vm346 = vcmp.lt.s32.totalorder %v312, 0
        %v347 = vsub.s32 0, %v312
        %v348 = vsel %vm346, %v347, %v312
        %v349 = vshrl.u32 %v348, 4
        %v350 = vand.u32 %v348, 15
        %v351 = vsub.s32 0, %v350
        %v352 = vsel %vm346, %v351, %v350
        %vm353 = vcmp.lt.s32.totalorder %v313, 0
        %v354 = vsub.s32 0, %v313
        %v355 = vsel %vm353, %v354, %v313
        %v356 = vshrl.u32 %v355, 4
        %v357 = vand.u32 %v355, 15
        %v358 = vsub.s32 0, %v357
        %v359 = vsel %vm353, %v358, %v357
        %vm360 = vcmp.lt.s32.totalorder %v314, 0
        %v361 = vsub.s32 0, %v314
        %v362 = vsel %vm360, %v361, %v314
        %v363 = vshrl.u32 %v362, 4
        %v364 = vand.u32 %v362, 15
        %v365 = vsub.s32 0, %v364
        %v366 = vsel %vm360, %v365, %v364
        %vm367 = vcmp.lt.s32.totalorder %v315, 0
        %v368 = vsub.s32 0, %v315
        %v369 = vsel %vm367, %v368, %v315
        %v370 = vshrl.u32 %v369, 4
        %v371 = vand.u32 %v369, 15
        %v372 = vsub.s32 0, %v371
        %v373 = vsel %vm367, %v372, %v371
        %vm374 = vcmp.lt.s32.totalorder %v316, 0
        %v375 = vsub.s32 0, %v316
        %v376 = vsel %vm374, %v375, %v316
        %v377 = vshrl.u32 %v376, 4
        %v378 = vand.u32 %v376, 15
        %v379 = vsub.s32 0, %v378
        %v380 = vsel %vm374, %v379, %v378
        %vm381 = vcmp.lt.s32.totalorder %v317, 0
        %v382 = vsub.s32 0, %v317
        %v383 = vsel %vm381, %v382, %v317
        %v384 = vshrl.u32 %v383, 4
        %v385 = vand.u32 %v383, 15
        %v386 = vsub.s32 0, %v385
        %v387 = vsel %vm381, %v386, %v385
        %vm388 = vcmp.lt.s32.totalorder %v318, 0
        %v389 = vsub.s32 0, %v318
        %v390 = vsel %vm388, %v389, %v318
        %v391 = vshrl.u32 %v390, 4
        %v392 = vand.u32 %v390, 15
        %v393 = vsub.s32 0, %v392
        %v394 = vsel %vm388, %v393, %v392
        %vm395 = vcmp.lt.s32.totalorder %v319, 0
        %v396 = vsub.s32 0, %v319
        %v397 = vsel %vm395, %v396, %v319
        %v398 = vshrl.u32 %v397, 4
        %v399 = vand.u32 %v397, 15
        %v400 = vsub.s32 0, %v399
        %v401 = vsel %vm395, %v400, %v399
        %vm402 = vcmp.lt.s32.totalorder %v320, 0
        %v403 = vsub.s32 0, %v320
        %v404 = vsel %vm402, %v403, %v320
        %v405 = vshrl.u32 %v404, 4
        %v406 = vand.u32 %v404, 15
        %v407 = vsub.s32 0, %v406
        %v408 = vsel %vm402, %v407, %v406
        %vm409 = vcmp.lt.s32.totalorder %v321, 0
        %v410 = vsub.s32 0, %v321
        %v411 = vsel %vm409, %v410, %v321
        %v412 = vshrl.u32 %v411, 4
        %v413 = vand.u32 %v411, 15
        %v414 = vsub.s32 0, %v413
        %v415 = vsel %vm409, %v414, %v413
        %vm416 = vcmp.lt.s32.totalorder %v322, 0
        %v417 = vsub.s32 0, %v322
        %v418 = vsel %vm416, %v417, %v322
        %v419 = vshrl.u32 %v418, 4
        %v420 = vand.u32 %v418, 15
        %v421 = vsub.s32 0, %v420
        %v422 = vsel %vm416, %v421, %v420
        %vm423 = vcmp.lt.s32.totalorder %v323, 0
        %v424 = vsub.s32 0, %v323
        %v425 = vsel %vm423, %v424, %v323
        %v426 = vshrl.u32 %v425, 4
        %v427 = vand.u32 %v425, 15
        %v428 = vsub.s32 0, %v427
        %v429 = vsel %vm423, %v428, %v427
        %vm430 = vcmp.lt.s32.totalorder %v324, 0
        %v431 = vsub.s32 0, %v324
        %v432 = vsel %vm430, %v431, %v324
        %v433 = vshrl.u32 %v432, 4
        %v434 = vand.u32 %v432, 15
        %v435 = vsub.s32 0, %v434
        %v436 = vsel %vm430, %v435, %v434
        %vm437 = vcmp.ne.s32.totalorder %v331, 0
        %vm438 = vcmp.ne.s32.totalorder %v338, 0
        %vm439 = vcmp.ne.s32.totalorder %v345, 0
        %vm440 = vcmp.ne.s32.totalorder %v352, 0
        %vm441 = vcmp.ne.s32.totalorder %v359, 0
        %vm442 = vcmp.ne.s32.totalorder %v366, 0
        %vm443 = vcmp.ne.s32.totalorder %v373, 0
        %vm444 = vcmp.ne.s32.totalorder %v380, 0
        %vm445 = vcmp.ne.s32.totalorder %v387, 0
        %vm446 = vcmp.ne.s32.totalorder %v394, 0
        %vm447 = vcmp.ne.s32.totalorder %v401, 0
        %vm448 = vcmp.ne.s32.totalorder %v408, 0
        %vm449 = vcmp.ne.s32.totalorder %v415, 0
        %vm450 = vcmp.ne.s32.totalorder %v422, 0
        %vm451 = vcmp.ne.s32.totalorder %v429, 0
        %vm452 = vcmp.ne.s32.totalorder %v436, 0
        %vm453 = vcmp.lt.s32.totalorder %v331, 0
        %vm454 = vcmp.lt.s32.totalorder %v338, 0
        %vm455 = vcmp.lt.s32.totalorder %v345, 0
        %vm456 = vcmp.lt.s32.totalorder %v352, 0
        %vm457 = vcmp.lt.s32.totalorder %v359, 0
        %vm458 = vcmp.lt.s32.totalorder %v366, 0
        %vm459 = vcmp.lt.s32.totalorder %v373, 0
        %vm460 = vcmp.lt.s32.totalorder %v380, 0
        %vm461 = vcmp.lt.s32.totalorder %v387, 0
        %vm462 = vcmp.lt.s32.totalorder %v394, 0
        %vm463 = vcmp.lt.s32.totalorder %v401, 0
        %vm464 = vcmp.lt.s32.totalorder %v408, 0
        %vm465 = vcmp.lt.s32.totalorder %v415, 0
        %vm466 = vcmp.lt.s32.totalorder %v422, 0
        %vm467 = vcmp.lt.s32.totalorder %v429, 0
        %vm468 = vcmp.lt.s32.totalorder %v436, 0
        %vm469 = vmand %vm453, %vm437
        %vm470 = vmand %vm454, %vm438
        %vm471 = vmand %vm455, %vm439
        %vm472 = vmand %vm456, %vm440
        %vm473 = vmand %vm457, %vm441
        %vm474 = vmand %vm458, %vm442
        %vm475 = vmand %vm459, %vm443
        %vm476 = vmand %vm460, %vm444
        %vm477 = vmand %vm461, %vm445
        %vm478 = vmand %vm462, %vm446
        %vm479 = vmand %vm463, %vm447
        %vm480 = vmand %vm464, %vm448
        %vm481 = vmand %vm465, %vm449
        %vm482 = vmand %vm466, %vm450
        %vm483 = vmand %vm467, %vm451
        %vm484 = vmand %vm468, %vm452
        %v485 = vadd.s32 %v331, 16
        %v486 = vadd.s32 %v338, 16
        %v487 = vadd.s32 %v345, 16
        %v488 = vadd.s32 %v352, 16
        %v489 = vadd.s32 %v359, 16
        %v490 = vadd.s32 %v366, 16
        %v491 = vadd.s32 %v373, 16
        %v492 = vadd.s32 %v380, 16
        %v493 = vadd.s32 %v387, 16
        %v494 = vadd.s32 %v394, 16
        %v495 = vadd.s32 %v401, 16
        %v496 = vadd.s32 %v408, 16
        %v497 = vadd.s32 %v415, 16
        %v498 = vadd.s32 %v422, 16
        %v499 = vadd.s32 %v429, 16
        %v500 = vadd.s32 %v436, 16
        %v501 = vsel %vm469, %v485, %v331
        %v502 = vsel %vm470, %v486, %v338
        %v503 = vsel %vm471, %v487, %v345
        %v504 = vsel %vm472, %v488, %v352
        %v505 = vsel %vm473, %v489, %v359
        %v506 = vsel %vm474, %v490, %v366
        %v507 = vsel %vm475, %v491, %v373
        %v508 = vsel %vm476, %v492, %v380
        %v509 = vsel %vm477, %v493, %v387
        %v510 = vsel %vm478, %v494, %v394
        %v511 = vsel %vm479, %v495, %v401
        %v512 = vsel %vm480, %v496, %v408
        %v513 = vsel %vm481, %v497, %v415
        %v514 = vsel %vm482, %v498, %v422
        %v515 = vsel %vm483, %v499, %v429
        %v516 = vsel %vm484, %v500, %v436
        %vm517 = vcmp.ne.s32.totalorder %v501, 0
        %vm518 = vcmp.ne.s32.totalorder %v502, 0
        %vm519 = vcmp.ne.s32.totalorder %v503, 0
        %vm520 = vcmp.ne.s32.totalorder %v504, 0
        %vm521 = vcmp.ne.s32.totalorder %v505, 0
        %vm522 = vcmp.ne.s32.totalorder %v506, 0
        %vm523 = vcmp.ne.s32.totalorder %v507, 0
        %vm524 = vcmp.ne.s32.totalorder %v508, 0
        %vm525 = vcmp.ne.s32.totalorder %v509, 0
        %vm526 = vcmp.ne.s32.totalorder %v510, 0
        %vm527 = vcmp.ne.s32.totalorder %v511, 0
        %vm528 = vcmp.ne.s32.totalorder %v512, 0
        %vm529 = vcmp.ne.s32.totalorder %v513, 0
        %vm530 = vcmp.ne.s32.totalorder %v514, 0
        %vm531 = vcmp.ne.s32.totalorder %v515, 0
        %vm532 = vcmp.ne.s32.totalorder %v516, 0
        %vm533 = vcmp.ne.s32.totalorder %v501, 15
        %vm534 = vcmp.ne.s32.totalorder %v502, 15
        %vm535 = vcmp.ne.s32.totalorder %v503, 15
        %vm536 = vcmp.ne.s32.totalorder %v504, 15
        %vm537 = vcmp.ne.s32.totalorder %v505, 15
        %vm538 = vcmp.ne.s32.totalorder %v506, 15
        %vm539 = vcmp.ne.s32.totalorder %v507, 15
        %vm540 = vcmp.ne.s32.totalorder %v508, 15
        %vm541 = vcmp.ne.s32.totalorder %v509, 15
        %vm542 = vcmp.ne.s32.totalorder %v510, 15
        %vm543 = vcmp.ne.s32.totalorder %v511, 15
        %vm544 = vcmp.ne.s32.totalorder %v512, 15
        %vm545 = vcmp.ne.s32.totalorder %v513, 15
        %vm546 = vcmp.ne.s32.totalorder %v514, 15
        %vm547 = vcmp.ne.s32.totalorder %v515, 15
        %vm548 = vcmp.ne.s32.totalorder %v516, 15
        %v549 = vld [vmem:[#allocation5] sm:$0xf]
        %v550 = vld [vmem:[#allocation5 + $0x4] sm:$0xf]
        %v551 = vld [vmem:[#allocation5 + $0x8] sm:$0xf]
        %v552 = vld [vmem:[#allocation5 + $0xc] sm:$0xf]
        %v553 = vld [vmem:[#allocation5 + $0x10] sm:$0xf]
        %v554 = vld [vmem:[#allocation5 + $0x14] sm:$0xf]
        %v555 = vld [vmem:[#allocation5 + $0x18] sm:$0xf]
        %v556 = vld [vmem:[#allocation5 + $0x1c] sm:$0xf]
        %v557 = vld [vmem:[#allocation5 + $0x20] sm:$0xf]
        %v558 = vld [vmem:[#allocation5 + $0x24] sm:$0xf]
        %v559 = vld [vmem:[#allocation5 + $0x28] sm:$0xf]
        %v560 = vld [vmem:[#allocation5 + $0x2c] sm:$0xf]
        %v561 = vld [vmem:[#allocation5 + $0x30] sm:$0xf]
        %v562 = vld [vmem:[#allocation5 + $0x34] sm:$0xf]
        %v563 = vld [vmem:[#allocation5 + $0x38] sm:$0xf]
        %v564 = vld [vmem:[#allocation5 + $0x3c] sm:$0xf]
        %v581 = vunpack.c.l.b16 %v276
        %v582 = vunpack.c.l.b16 %v277
        %v583 = vunpack.c.l.b16 %v278
        %v584 = vunpack.c.l.b16 %v279
        %v585 = vunpack.c.l.b16 %v280
        %v586 = vunpack.c.l.b16 %v281
        %v587 = vunpack.c.l.b16 %v282
        %v588 = vunpack.c.l.b16 %v283
        %v589 = vunpack.c.l.b16 %v284
        %v590 = vunpack.c.l.b16 %v285
        %v591 = vunpack.c.l.b16 %v286
        %v592 = vunpack.c.l.b16 %v287
        %v593 = vunpack.c.l.b16 %v288
        %v594 = vunpack.c.l.b16 %v289
        %v595 = vunpack.c.l.b16 %v290
        %v596 = vunpack.c.l.b16 %v291
        %v597 = vpack.c.b16 %v582, %v581
        %v598 = vpack.c.b16 %v584, %v583
        %v599 = vpack.c.b16 %v586, %v585
        %v600 = vpack.c.b16 %v588, %v587
        %v601 = vpack.c.b16 %v590, %v589
        %v602 = vpack.c.b16 %v592, %v591
        %v603 = vpack.c.b16 %v594, %v593
        %v604 = vpack.c.b16 %v596, %v595
        %v629 = vunpack.c.l.b16 %v549
        %v630 = vunpack.c.l.b16 %v550
        %v631 = vunpack.c.l.b16 %v551
        %v632 = vunpack.c.l.b16 %v552
        %v633 = vunpack.c.l.b16 %v553
        %v634 = vunpack.c.l.b16 %v554
        %v635 = vunpack.c.l.b16 %v555
        %v636 = vunpack.c.l.b16 %v556
        %v637 = vunpack.c.l.b16 %v557
        %v638 = vunpack.c.l.b16 %v558
        %v639 = vunpack.c.l.b16 %v559
        %v640 = vunpack.c.l.b16 %v560
        %v641 = vunpack.c.l.b16 %v561
        %v642 = vunpack.c.l.b16 %v562
        %v643 = vunpack.c.l.b16 %v563
        %v644 = vunpack.c.l.b16 %v564
        %v645 = vpack.c.b16 %v630, %v629
        %v646 = vpack.c.b16 %v632, %v631
        %v647 = vpack.c.b16 %v634, %v633
        %v648 = vpack.c.b16 %v636, %v635
        %v649 = vpack.c.b16 %v638, %v637
        %v650 = vpack.c.b16 %v640, %v639
        %v651 = vpack.c.b16 %v642, %v641
        %v652 = vpack.c.b16 %v644, %v643
        %661 = vmatprep.subr.bf16.mxu0 0
        %662 = vmatpush1.bf16.msra.mxu0 %v652
        %663 = vmatprep.subr.bf16.mxu0 0
        %664 = vmatpush1.bf16.msra.mxu0 %v651
        %665 = vmatprep.subr.bf16.mxu0 0
        %666 = vmatpush1.bf16.msra.mxu0 %v650
        %667 = vmatprep.subr.bf16.mxu0 0
        %668 = vmatpush1.bf16.msra.mxu0 %v649
        %669 = vmatprep.subr.bf16.mxu0 0
        %670 = vmatpush1.bf16.msra.mxu0 %v648
        %671 = vmatprep.subr.bf16.mxu0 0
        %672 = vmatpush1.bf16.msra.mxu0 %v647
        %673 = vmatprep.subr.bf16.mxu0 0
        %674 = vmatpush1.bf16.msra.mxu0 %v646
        %675 = vmatprep.subr.bf16.mxu0 0
        %676 = vmatpush1.bf16.msra.mxu0 %v645
        %677 = vmatprep.subr.bf16.mxu0 0
        %678 = vmatpush2.bf16.msra.mxu0 0
        %679 = vmatprep.subr.bf16.mxu0 0
        %680 = vmatpush2.bf16.msra.mxu0 0
        %681 = vmatprep.subr.bf16.mxu0 0
        %682 = vmatpush2.bf16.msra.mxu0 0
        %683 = vmatprep.subr.bf16.mxu0 0
        %684 = vmatpush2.bf16.msra.mxu0 0
        %685 = vmatprep.subr.bf16.mxu0 0
        %686 = vmatpush2.bf16.msra.mxu0 0
        %687 = vmatprep.subr.bf16.mxu0 0
        %688 = vmatpush2.bf16.msra.mxu0 0
        %689 = vmatprep.subr.bf16.mxu0 0
        %690 = vmatpush2.bf16.msra.mxu0 0
        %691 = vmatprep.subr.bf16.mxu0 0
        %692 = vmatpush2.bf16.msra.mxu0 0
        %693 = vmatprep.mubr.bf16.mxu0 0
        %694 = vmatmul.mubr.bf16.gmra.mxu0 %v597
        %v695 = vpop.f32.mrf.mxu0
        %v696 = vadd.f32 0.0, %v695
        %v697 = vpop.f32.mrf.mxu0
        %v698 = vpop.f32.mrf.mxu0
        %v699 = vadd.f32 0.0, %v698
        %v700 = vpop.f32.mrf.mxu0
        %701 = vmatprep.mubr.bf16.mxu0 0
        %702 = vmatmul.mubr.bf16.gmra.mxu0 %v598
        %v703 = vpop.f32.mrf.mxu0
        %v704 = vadd.f32 0.0, %v703
        %v705 = vpop.f32.mrf.mxu0
        %v706 = vpop.f32.mrf.mxu0
        %v707 = vadd.f32 0.0, %v706
        %v708 = vpop.f32.mrf.mxu0
        %709 = vmatprep.mubr.bf16.mxu0 0
        %710 = vmatmul.mubr.bf16.gmra.mxu0 %v599
        %v711 = vpop.f32.mrf.mxu0
        %v712 = vadd.f32 0.0, %v711
        %v713 = vpop.f32.mrf.mxu0
        %v714 = vpop.f32.mrf.mxu0
        %v715 = vadd.f32 0.0, %v714
        %v716 = vpop.f32.mrf.mxu0
        %717 = vmatprep.mubr.bf16.mxu0 0
        %718 = vmatmul.mubr.bf16.gmra.mxu0 %v600
        %v719 = vpop.f32.mrf.mxu0
        %v720 = vadd.f32 0.0, %v719
        %v721 = vpop.f32.mrf.mxu0
        %v722 = vpop.f32.mrf.mxu0
        %v723 = vadd.f32 0.0, %v722
        %v724 = vpop.f32.mrf.mxu0
        %725 = vmatprep.mubr.bf16.mxu0 0
        %726 = vmatmul.mubr.bf16.gmra.mxu0 %v601
        %v727 = vpop.f32.mrf.mxu0
        %v728 = vadd.f32 0.0, %v727
        %v729 = vpop.f32.mrf.mxu0
        %v730 = vpop.f32.mrf.mxu0
        %v731 = vadd.f32 0.0, %v730
        %v732 = vpop.f32.mrf.mxu0
        %733 = vmatprep.mubr.bf16.mxu0 0
        %734 = vmatmul.mubr.bf16.gmra.mxu0 %v602
        %v735 = vpop.f32.mrf.mxu0
        %v736 = vadd.f32 0.0, %v735
        %v737 = vpop.f32.mrf.mxu0
        %v738 = vpop.f32.mrf.mxu0
        %v739 = vadd.f32 0.0, %v738
        %v740 = vpop.f32.mrf.mxu0
        %741 = vmatprep.mubr.bf16.mxu0 0
        %742 = vmatmul.mubr.bf16.gmra.mxu0 %v603
        %v743 = vpop.f32.mrf.mxu0
        %v744 = vadd.f32 0.0, %v743
        %v745 = vpop.f32.mrf.mxu0
        %v746 = vpop.f32.mrf.mxu0
        %v747 = vadd.f32 0.0, %v746
        %v748 = vpop.f32.mrf.mxu0
        %749 = vmatprep.mubr.bf16.mxu0 0
        %750 = vmatmul.mubr.bf16.gmra.mxu0 %v604
        %v751 = vpop.f32.mrf.mxu0
        %v752 = vadd.f32 0.0, %v751
        %v753 = vpop.f32.mrf.mxu0
        %v754 = vpop.f32.mrf.mxu0
        %v755 = vadd.f32 0.0, %v754
        %v756 = vpop.f32.mrf.mxu0
        %757 = vdwg.mxu0
        %s758 = scalar_lea.vmem [#allocation5], 64
        %v759 = vld [vmem:[%s758] sm:$0xf]
        %v760 = vld [vmem:[%s758 + $0x4] sm:$0xf]
        %v761 = vld [vmem:[%s758 + $0x8] sm:$0xf]
        %v762 = vld [vmem:[%s758 + $0xc] sm:$0xf]
        %v763 = vld [vmem:[%s758 + $0x10] sm:$0xf]
        %v764 = vld [vmem:[%s758 + $0x14] sm:$0xf]
        %v765 = vld [vmem:[%s758 + $0x18] sm:$0xf]
        %v766 = vld [vmem:[%s758 + $0x1c] sm:$0xf]
        %v767 = vld [vmem:[%s758 + $0x20] sm:$0xf]
        %v768 = vld [vmem:[%s758 + $0x24] sm:$0xf]
        %v769 = vld [vmem:[%s758 + $0x28] sm:$0xf]
        %v770 = vld [vmem:[%s758 + $0x2c] sm:$0xf]
        %v771 = vld [vmem:[%s758 + $0x30] sm:$0xf]
        %v772 = vld [vmem:[%s758 + $0x34] sm:$0xf]
        %v773 = vld [vmem:[%s758 + $0x38] sm:$0xf]
        %v774 = vld [vmem:[%s758 + $0x3c] sm:$0xf]
        %s775 = scalar_lea.vmem [#allocation5], 128
        %v776 = vld [vmem:[%s775] sm:$0xf]
        %v777 = vld [vmem:[%s775 + $0x4] sm:$0xf]
        %v778 = vld [vmem:[%s775 + $0x8] sm:$0xf]
        %v779 = vld [vmem:[%s775 + $0xc] sm:$0xf]
        %v780 = vld [vmem:[%s775 + $0x10] sm:$0xf]
        %v781 = vld [vmem:[%s775 + $0x14] sm:$0xf]
        %v782 = vld [vmem:[%s775 + $0x18] sm:$0xf]
        %v783 = vld [vmem:[%s775 + $0x1c] sm:$0xf]
        %v784 = vld [vmem:[%s775 + $0x20] sm:$0xf]
        %v785 = vld [vmem:[%s775 + $0x24] sm:$0xf]
        %v786 = vld [vmem:[%s775 + $0x28] sm:$0xf]
        %v787 = vld [vmem:[%s775 + $0x2c] sm:$0xf]
        %v788 = vld [vmem:[%s775 + $0x30] sm:$0xf]
        %v789 = vld [vmem:[%s775 + $0x34] sm:$0xf]
        %v790 = vld [vmem:[%s775 + $0x38] sm:$0xf]
        %v791 = vld [vmem:[%s775 + $0x3c] sm:$0xf]
        %v808 = vunpack.c.l.b16 %v776
        %v809 = vunpack.c.l.b16 %v777
        %v810 = vunpack.c.l.b16 %v778
        %v811 = vunpack.c.l.b16 %v779
        %v812 = vunpack.c.l.b16 %v780
        %v813 = vunpack.c.l.b16 %v781
        %v814 = vunpack.c.l.b16 %v782
        %v815 = vunpack.c.l.b16 %v783
        %v816 = vunpack.c.l.b16 %v784
        %v817 = vunpack.c.l.b16 %v785
        %v818 = vunpack.c.l.b16 %v786
        %v819 = vunpack.c.l.b16 %v787
        %v820 = vunpack.c.l.b16 %v788
        %v821 = vunpack.c.l.b16 %v789
        %v822 = vunpack.c.l.b16 %v790
        %v823 = vunpack.c.l.b16 %v791
        %v824 = vpack.c.b16 %v809, %v808
        %v825 = vpack.c.b16 %v811, %v810
        %v826 = vpack.c.b16 %v813, %v812
        %v827 = vpack.c.b16 %v815, %v814
        %v828 = vpack.c.b16 %v817, %v816
        %v829 = vpack.c.b16 %v819, %v818
        %v830 = vpack.c.b16 %v821, %v820
        %v831 = vpack.c.b16 %v823, %v822
        %840 = vmatprep.subr.bf16.mxu0 0
        %841 = vmatpush1.bf16.msra.mxu0 %v831
        %842 = vmatprep.subr.bf16.mxu0 0
        %843 = vmatpush1.bf16.msra.mxu0 %v830
        %844 = vmatprep.subr.bf16.mxu0 0
        %845 = vmatpush1.bf16.msra.mxu0 %v829
        %846 = vmatprep.subr.bf16.mxu0 0
        %847 = vmatpush1.bf16.msra.mxu0 %v828
        %848 = vmatprep.subr.bf16.mxu0 0
        %849 = vmatpush1.bf16.msra.mxu0 %v827
        %850 = vmatprep.subr.bf16.mxu0 0
        %851 = vmatpush1.bf16.msra.mxu0 %v826
        %852 = vmatprep.subr.bf16.mxu0 0
        %853 = vmatpush1.bf16.msra.mxu0 %v825
        %854 = vmatprep.subr.bf16.mxu0 0
        %855 = vmatpush1.bf16.msra.mxu0 %v824
        %856 = vmatprep.subr.bf16.mxu0 0
        %857 = vmatpush2.bf16.msra.mxu0 0
        %858 = vmatprep.subr.bf16.mxu0 0
        %859 = vmatpush2.bf16.msra.mxu0 0
        %860 = vmatprep.subr.bf16.mxu0 0
        %861 = vmatpush2.bf16.msra.mxu0 0
        %862 = vmatprep.subr.bf16.mxu0 0
        %863 = vmatpush2.bf16.msra.mxu0 0
        %864 = vmatprep.subr.bf16.mxu0 0
        %865 = vmatpush2.bf16.msra.mxu0 0
        %866 = vmatprep.subr.bf16.mxu0 0
        %867 = vmatpush2.bf16.msra.mxu0 0
        %868 = vmatprep.subr.bf16.mxu0 0
        %869 = vmatpush2.bf16.msra.mxu0 0
        %870 = vmatprep.subr.bf16.mxu0 0
        %871 = vmatpush2.bf16.msra.mxu0 0
        %872 = vmatprep.mubr.bf16.mxu0 0
        %873 = vmatmul.mubr.bf16.gmra.mxu0 %v597
        %v874 = vpop.f32.mrf.mxu0
        %v875 = vadd.f32 0.0, %v874
        %v876 = vpop.f32.mrf.mxu0
        %v877 = vpop.f32.mrf.mxu0
        %v878 = vadd.f32 0.0, %v877
        %v879 = vpop.f32.mrf.mxu0
        %880 = vmatprep.mubr.bf16.mxu0 0
        %881 = vmatmul.mubr.bf16.gmra.mxu0 %v598
        %v882 = vpop.f32.mrf.mxu0
        %v883 = vadd.f32 0.0, %v882
        %v884 = vpop.f32.mrf.mxu0
        %v885 = vpop.f32.mrf.mxu0
        %v886 = vadd.f32 0.0, %v885
        %v887 = vpop.f32.mrf.mxu0
        %888 = vmatprep.mubr.bf16.mxu0 0
        %889 = vmatmul.mubr.bf16.gmra.mxu0 %v599
        %v890 = vpop.f32.mrf.mxu0
        %v891 = vadd.f32 0.0, %v890
        %v892 = vpop.f32.mrf.mxu0
        %v893 = vpop.f32.mrf.mxu0
        %v894 = vadd.f32 0.0, %v893
        %v895 = vpop.f32.mrf.mxu0
        %896 = vmatprep.mubr.bf16.mxu0 0
        %897 = vmatmul.mubr.bf16.gmra.mxu0 %v600
        %v898 = vpop.f32.mrf.mxu0
        %v899 = vadd.f32 0.0, %v898
        %v900 = vpop.f32.mrf.mxu0
        %v901 = vpop.f32.mrf.mxu0
        %v902 = vadd.f32 0.0, %v901
        %v903 = vpop.f32.mrf.mxu0
        %904 = vmatprep.mubr.bf16.mxu0 0
        %905 = vmatmul.mubr.bf16.gmra.mxu0 %v601
        %v906 = vpop.f32.mrf.mxu0
        %v907 = vadd.f32 0.0, %v906
        %v908 = vpop.f32.mrf.mxu0
        %v909 = vpop.f32.mrf.mxu0
        %v910 = vadd.f32 0.0, %v909
        %v911 = vpop.f32.mrf.mxu0
        %912 = vmatprep.mubr.bf16.mxu0 0
        %913 = vmatmul.mubr.bf16.gmra.mxu0 %v602
        %v914 = vpop.f32.mrf.mxu0
        %v915 = vadd.f32 0.0, %v914
        %v916 = vpop.f32.mrf.mxu0
        %v917 = vpop.f32.mrf.mxu0
        %v918 = vadd.f32 0.0, %v917
        %v919 = vpop.f32.mrf.mxu0
        %920 = vmatprep.mubr.bf16.mxu0 0
        %921 = vmatmul.mubr.bf16.gmra.mxu0 %v603
        %v922 = vpop.f32.mrf.mxu0
        %v923 = vadd.f32 0.0, %v922
        %v924 = vpop.f32.mrf.mxu0
        %v925 = vpop.f32.mrf.mxu0
        %v926 = vadd.f32 0.0, %v925
        %v927 = vpop.f32.mrf.mxu0
        %928 = vmatprep.mubr.bf16.mxu0 0
        %929 = vmatmul.mubr.bf16.gmra.mxu0 %v604
        %v930 = vpop.f32.mrf.mxu0
        %v931 = vadd.f32 0.0, %v930
        %v932 = vpop.f32.mrf.mxu0
        %v933 = vpop.f32.mrf.mxu0
        %v934 = vadd.f32 0.0, %v933
        %v935 = vpop.f32.mrf.mxu0
        %936 = vdwg.mxu0
        %v937 = vrot.slane %v696, 7
        %v938 = vrot.slane %v699, 7
        %v939 = vrot.slane %v704, 7
        %v940 = vrot.slane %v707, 7
        %v941 = vrot.slane %v712, 7
        %v942 = vrot.slane %v715, 7
        %v943 = vrot.slane %v720, 7
        %v944 = vrot.slane %v723, 7
        %v945 = vrot.slane %v728, 7
        %v946 = vrot.slane %v731, 7
        %v947 = vrot.slane %v736, 7
        %v948 = vrot.slane %v739, 7
        %v949 = vrot.slane %v744, 7
        %v950 = vrot.slane %v747, 7
        %v951 = vrot.slane %v752, 7
        %v952 = vrot.slane %v755, 7
        %vm953 = vcmp.lt.s32.totalorder %v309, 1
        %v954 = vsel %vm953, %v951, %v952
        %v955 = vsel %vm953, %v950, %v951
        %v956 = vsel %vm953, %v949, %v950
        %v957 = vsel %vm953, %v948, %v949
        %v958 = vsel %vm953, %v947, %v948
        %v959 = vsel %vm953, %v946, %v947
        %v960 = vsel %vm953, %v945, %v946
        %v961 = vsel %vm953, %v944, %v945
        %v962 = vsel %vm953, %v943, %v944
        %v963 = vsel %vm953, %v942, %v943
        %v964 = vsel %vm953, %v941, %v942
        %v965 = vsel %vm953, %v940, %v941
        %v966 = vsel %vm953, %v939, %v940
        %v967 = vsel %vm953, %v938, %v939
        %v968 = vsel %vm953, %v937, %v938
        %v969 = vsel %vm953, %v952, %v937
        %v970 = vsel %vm517, %v969, 0.0
        %v971 = vsel %vm518, %v968, 0.0
        %v972 = vsel %vm519, %v967, 0.0
        %v973 = vsel %vm520, %v966, 0.0
        %v974 = vsel %vm521, %v965, 0.0
        %v975 = vsel %vm522, %v964, 0.0
        %v976 = vsel %vm523, %v963, 0.0
        %v977 = vsel %vm524, %v962, 0.0
        %v978 = vsel %vm525, %v961, 0.0
        %v979 = vsel %vm526, %v960, 0.0
        %v980 = vsel %vm527, %v959, 0.0
        %v981 = vsel %vm528, %v958, 0.0
        %v982 = vsel %vm529, %v957, 0.0
        %v983 = vsel %vm530, %v956, 0.0
        %v984 = vsel %vm531, %v955, 0.0
        %v985 = vsel %vm532, %v954, 0.0
        %v1002 = vunpack.c.l.b16 %v759
        %v1003 = vunpack.c.l.b16 %v760
        %v1004 = vunpack.c.l.b16 %v761
        %v1005 = vunpack.c.l.b16 %v762
        %v1006 = vunpack.c.l.b16 %v763
        %v1007 = vunpack.c.l.b16 %v764
        %v1008 = vunpack.c.l.b16 %v765
        %v1009 = vunpack.c.l.b16 %v766
        %v1010 = vunpack.c.l.b16 %v767
        %v1011 = vunpack.c.l.b16 %v768
        %v1012 = vunpack.c.l.b16 %v769
        %v1013 = vunpack.c.l.b16 %v770
        %v1014 = vunpack.c.l.b16 %v771
        %v1015 = vunpack.c.l.b16 %v772
        %v1016 = vunpack.c.l.b16 %v773
        %v1017 = vunpack.c.l.b16 %v774
        %v1018 = vpack.c.b16 %v1003, %v1002
        %v1019 = vpack.c.b16 %v1005, %v1004
        %v1020 = vpack.c.b16 %v1007, %v1006
        %v1021 = vpack.c.b16 %v1009, %v1008
        %v1022 = vpack.c.b16 %v1011, %v1010
        %v1023 = vpack.c.b16 %v1013, %v1012
        %v1024 = vpack.c.b16 %v1015, %v1014
        %v1025 = vpack.c.b16 %v1017, %v1016
        %1034 = vmatprep.subr.bf16.mxu0 0
        %1035 = vmatpush1.bf16.msra.mxu0 %v1025
        %1036 = vmatprep.subr.bf16.mxu0 0
        %1037 = vmatpush1.bf16.msra.mxu0 %v1024
        %1038 = vmatprep.subr.bf16.mxu0 0
        %1039 = vmatpush1.bf16.msra.mxu0 %v1023
        %1040 = vmatprep.subr.bf16.mxu0 0
        %1041 = vmatpush1.bf16.msra.mxu0 %v1022
        %1042 = vmatprep.subr.bf16.mxu0 0
        %1043 = vmatpush1.bf16.msra.mxu0 %v1021
        %1044 = vmatprep.subr.bf16.mxu0 0
        %1045 = vmatpush1.bf16.msra.mxu0 %v1020
        %1046 = vmatprep.subr.bf16.mxu0 0
        %1047 = vmatpush1.bf16.msra.mxu0 %v1019
        %1048 = vmatprep.subr.bf16.mxu0 0
        %1049 = vmatpush1.bf16.msra.mxu0 %v1018
        %1050 = vmatprep.subr.bf16.mxu0 0
        %1051 = vmatpush2.bf16.msra.mxu0 0
        %1052 = vmatprep.subr.bf16.mxu0 0
        %1053 = vmatpush2.bf16.msra.mxu0 0
        %1054 = vmatprep.subr.bf16.mxu0 0
        %1055 = vmatpush2.bf16.msra.mxu0 0
        %1056 = vmatprep.subr.bf16.mxu0 0
        %1057 = vmatpush2.bf16.msra.mxu0 0
        %1058 = vmatprep.subr.bf16.mxu0 0
        %1059 = vmatpush2.bf16.msra.mxu0 0
        %1060 = vmatprep.subr.bf16.mxu0 0
        %1061 = vmatpush2.bf16.msra.mxu0 0
        %1062 = vmatprep.subr.bf16.mxu0 0
        %1063 = vmatpush2.bf16.msra.mxu0 0
        %1064 = vmatprep.subr.bf16.mxu0 0
        %1065 = vmatpush2.bf16.msra.mxu0 0
        %1066 = vmatprep.mubr.bf16.mxu0 0
        %1067 = vmatmul.mubr.bf16.gmra.mxu0 %v597
        %v1068 = vpop.f32.mrf.mxu0
        %v1069 = vadd.f32 %v970, %v1068
        %v1070 = vpop.f32.mrf.mxu0
        %v1071 = vpop.f32.mrf.mxu0
        %v1072 = vadd.f32 %v971, %v1071
        %v1073 = vpop.f32.mrf.mxu0
        %1074 = vmatprep.mubr.bf16.mxu0 0
        %1075 = vmatmul.mubr.bf16.gmra.mxu0 %v598
        %v1076 = vpop.f32.mrf.mxu0
        %v1077 = vadd.f32 %v972, %v1076
        %v1078 = vpop.f32.mrf.mxu0
        %v1079 = vpop.f32.mrf.mxu0
        %v1080 = vadd.f32 %v973, %v1079
        %v1081 = vpop.f32.mrf.mxu0
        %1082 = vmatprep.mubr.bf16.mxu0 0
        %1083 = vmatmul.mubr.bf16.gmra.mxu0 %v599
        %v1084 = vpop.f32.mrf.mxu0
        %v1085 = vadd.f32 %v974, %v1084
        %v1086 = vpop.f32.mrf.mxu0
        %v1087 = vpop.f32.mrf.mxu0
        %v1088 = vadd.f32 %v975, %v1087
        %v1089 = vpop.f32.mrf.mxu0
        %1090 = vmatprep.mubr.bf16.mxu0 0
        %1091 = vmatmul.mubr.bf16.gmra.mxu0 %v600
        %v1092 = vpop.f32.mrf.mxu0
        %v1093 = vadd.f32 %v976, %v1092
        %v1094 = vpop.f32.mrf.mxu0
        %v1095 = vpop.f32.mrf.mxu0
        %v1096 = vadd.f32 %v977, %v1095
        %v1097 = vpop.f32.mrf.mxu0
        %1098 = vmatprep.mubr.bf16.mxu0 0
        %1099 = vmatmul.mubr.bf16.gmra.mxu0 %v601
        %v1100 = vpop.f32.mrf.mxu0
        %v1101 = vadd.f32 %v978, %v1100
        %v1102 = vpop.f32.mrf.mxu0
        %v1103 = vpop.f32.mrf.mxu0
        %v1104 = vadd.f32 %v979, %v1103
        %v1105 = vpop.f32.mrf.mxu0
        %1106 = vmatprep.mubr.bf16.mxu0 0
        %1107 = vmatmul.mubr.bf16.gmra.mxu0 %v602
        %v1108 = vpop.f32.mrf.mxu0
        %v1109 = vadd.f32 %v980, %v1108
        %v1110 = vpop.f32.mrf.mxu0
        %v1111 = vpop.f32.mrf.mxu0
        %v1112 = vadd.f32 %v981, %v1111
        %v1113 = vpop.f32.mrf.mxu0
        %1114 = vmatprep.mubr.bf16.mxu0 0
        %1115 = vmatmul.mubr.bf16.gmra.mxu0 %v603
        %v1116 = vpop.f32.mrf.mxu0
        %v1117 = vadd.f32 %v982, %v1116
        %v1118 = vpop.f32.mrf.mxu0
        %v1119 = vpop.f32.mrf.mxu0
        %v1120 = vadd.f32 %v983, %v1119
        %v1121 = vpop.f32.mrf.mxu0
        %1122 = vmatprep.mubr.bf16.mxu0 0
        %1123 = vmatmul.mubr.bf16.gmra.mxu0 %v604
        %v1124 = vpop.f32.mrf.mxu0
        %v1125 = vadd.f32 %v984, %v1124
        %v1126 = vpop.f32.mrf.mxu0
        %v1127 = vpop.f32.mrf.mxu0
        %v1128 = vadd.f32 %v985, %v1127
        %v1129 = vpop.f32.mrf.mxu0
        %1130 = vdwg.mxu0
        %v1131 = vrot.slane %v875, 1
        %v1132 = vrot.slane %v878, 1
        %v1133 = vrot.slane %v883, 1
        %v1134 = vrot.slane %v886, 1
        %v1135 = vrot.slane %v891, 1
        %v1136 = vrot.slane %v894, 1
        %v1137 = vrot.slane %v899, 1
        %v1138 = vrot.slane %v902, 1
        %v1139 = vrot.slane %v907, 1
        %v1140 = vrot.slane %v910, 1
        %v1141 = vrot.slane %v915, 1
        %v1142 = vrot.slane %v918, 1
        %v1143 = vrot.slane %v923, 1
        %v1144 = vrot.slane %v926, 1
        %v1145 = vrot.slane %v931, 1
        %v1146 = vrot.slane %v934, 1
        %vm1147 = vcmp.lt.s32.totalorder %v309, 7
        %v1148 = vsel %vm1147, %v1145, %v1146
        %v1149 = vsel %vm1147, %v1144, %v1145
        %v1150 = vsel %vm1147, %v1143, %v1144
        %v1151 = vsel %vm1147, %v1142, %v1143
        %v1152 = vsel %vm1147, %v1141, %v1142
        %v1153 = vsel %vm1147, %v1140, %v1141
        %v1154 = vsel %vm1147, %v1139, %v1140
        %v1155 = vsel %vm1147, %v1138, %v1139
        %v1156 = vsel %vm1147, %v1137, %v1138
        %v1157 = vsel %vm1147, %v1136, %v1137
        %v1158 = vsel %vm1147, %v1135, %v1136
        %v1159 = vsel %vm1147, %v1134, %v1135
        %v1160 = vsel %vm1147, %v1133, %v1134
        %v1161 = vsel %vm1147, %v1132, %v1133
        %v1162 = vsel %vm1147, %v1131, %v1132
        %v1163 = vsel %vm1147, %v1146, %v1131
        %v1164 = vsel %vm533, %v1162, 0.0
        %v1165 = vsel %vm534, %v1161, 0.0
        %v1166 = vsel %vm535, %v1160, 0.0
        %v1167 = vsel %vm536, %v1159, 0.0
        %v1168 = vsel %vm537, %v1158, 0.0
        %v1169 = vsel %vm538, %v1157, 0.0
        %v1170 = vsel %vm539, %v1156, 0.0
        %v1171 = vsel %vm540, %v1155, 0.0
        %v1172 = vsel %vm541, %v1154, 0.0
        %v1173 = vsel %vm542, %v1153, 0.0
        %v1174 = vsel %vm543, %v1152, 0.0
        %v1175 = vsel %vm544, %v1151, 0.0
        %v1176 = vsel %vm545, %v1150, 0.0
        %v1177 = vsel %vm546, %v1149, 0.0
        %v1178 = vsel %vm547, %v1148, 0.0
        %v1179 = vsel %vm548, %v1163, 0.0
        %v1180 = vadd.f32 %v1069, %v1164
        %v1181 = vadd.f32 %v1072, %v1165
        %v1182 = vadd.f32 %v1077, %v1166
        %v1183 = vadd.f32 %v1080, %v1167
        %v1184 = vadd.f32 %v1085, %v1168
        %v1185 = vadd.f32 %v1088, %v1169
        %v1186 = vadd.f32 %v1093, %v1170
        %v1187 = vadd.f32 %v1096, %v1171
        %v1188 = vadd.f32 %v1101, %v1172
        %v1189 = vadd.f32 %v1104, %v1173
        %v1190 = vadd.f32 %v1109, %v1174
        %v1191 = vadd.f32 %v1112, %v1175
        %v1192 = vadd.f32 %v1117, %v1176
        %v1193 = vadd.f32 %v1120, %v1177
        %v1194 = vadd.f32 %v1125, %v1178
        %v1195 = vadd.f32 %v1128, %v1179
        %v1196 = vld [vmem:[%s2] sm:$0x1]
        %v1198 = vlaneseq
        %v1199 = vshrl.u32 %v1198, 7
        %v1200 = vsub.s32 0, %v1199
        %v1201 = vrot.slane %v1196, %v1200
        %v1203 = vadd.f32 %v1180, %v1201
        %v1204 = vadd.f32 %v1181, %v1201
        %v1205 = vadd.f32 %v1182, %v1201
        %v1206 = vadd.f32 %v1183, %v1201
        %v1207 = vadd.f32 %v1184, %v1201
        %v1208 = vadd.f32 %v1185, %v1201
        %v1209 = vadd.f32 %v1186, %v1201
        %v1210 = vadd.f32 %v1187, %v1201
        %v1211 = vadd.f32 %v1188, %v1201
        %v1212 = vadd.f32 %v1189, %v1201
        %v1213 = vadd.f32 %v1190, %v1201
        %v1214 = vadd.f32 %v1191, %v1201
        %v1215 = vadd.f32 %v1192, %v1201
        %v1216 = vadd.f32 %v1193, %v1201
        %v1217 = vadd.f32 %v1194, %v1201
        %v1218 = vadd.f32 %v1195, %v1201
        %v1219 = vmax.f32 %v1203, 0.0
        %v1220 = vmax.f32 %v1204, 0.0
        %v1221 = vmax.f32 %v1205, 0.0
        %v1222 = vmax.f32 %v1206, 0.0
        %v1223 = vmax.f32 %v1207, 0.0
        %v1224 = vmax.f32 %v1208, 0.0
        %v1225 = vmax.f32 %v1209, 0.0
        %v1226 = vmax.f32 %v1210, 0.0
        %v1227 = vmax.f32 %v1211, 0.0
        %v1228 = vmax.f32 %v1212, 0.0
        %v1229 = vmax.f32 %v1213, 0.0
        %v1230 = vmax.f32 %v1214, 0.0
        %v1231 = vmax.f32 %v1215, 0.0
        %v1232 = vmax.f32 %v1216, 0.0
        %v1233 = vmax.f32 %v1217, 0.0
        %v1234 = vmax.f32 %v1218, 0.0
        %v1235 = vpack.c.bf16 %v1220, %v1219
        %v1236 = vpack.c.bf16 %v1222, %v1221
        %v1237 = vpack.c.bf16 %v1224, %v1223
        %v1238 = vpack.c.bf16 %v1226, %v1225
        %v1239 = vpack.c.bf16 %v1228, %v1227
        %v1240 = vpack.c.bf16 %v1230, %v1229
        %v1241 = vpack.c.bf16 %v1232, %v1231
        %v1242 = vpack.c.bf16 %v1234, %v1233
        %v1243 = vld [vmem:[#allocation7] sm:$0xf]
        %v1244 = vld [vmem:[#allocation7 + $0x4] sm:$0xf]
        %v1245 = vld [vmem:[#allocation7 + $0x8] sm:$0xf]
        %v1246 = vld [vmem:[#allocation7 + $0xc] sm:$0xf]
        %v1247 = vld [vmem:[#allocation7 + $0x10] sm:$0xf]
        %v1248 = vld [vmem:[#allocation7 + $0x14] sm:$0xf]
        %v1249 = vld [vmem:[#allocation7 + $0x18] sm:$0xf]
        %v1250 = vld [vmem:[#allocation7 + $0x1c] sm:$0xf]
        %v1251 = vld [vmem:[#allocation7 + $0x20] sm:$0xf]
        %v1252 = vld [vmem:[#allocation7 + $0x24] sm:$0xf]
        %v1253 = vld [vmem:[#allocation7 + $0x28] sm:$0xf]
        %v1254 = vld [vmem:[#allocation7 + $0x2c] sm:$0xf]
        %v1255 = vld [vmem:[#allocation7 + $0x30] sm:$0xf]
        %v1256 = vld [vmem:[#allocation7 + $0x34] sm:$0xf]
        %v1257 = vld [vmem:[#allocation7 + $0x38] sm:$0xf]
        %v1258 = vld [vmem:[#allocation7 + $0x3c] sm:$0xf]
        %v1275 = vunpack.c.l.b16 %v1243
        %v1276 = vunpack.c.l.b16 %v1244
        %v1277 = vunpack.c.l.b16 %v1245
        %v1278 = vunpack.c.l.b16 %v1246
        %v1279 = vunpack.c.l.b16 %v1247
        %v1280 = vunpack.c.l.b16 %v1248
        %v1281 = vunpack.c.l.b16 %v1249
        %v1282 = vunpack.c.l.b16 %v1250
        %v1283 = vunpack.c.l.b16 %v1251
        %v1284 = vunpack.c.l.b16 %v1252
        %v1285 = vunpack.c.l.b16 %v1253
        %v1286 = vunpack.c.l.b16 %v1254
        %v1287 = vunpack.c.l.b16 %v1255
        %v1288 = vunpack.c.l.b16 %v1256
        %v1289 = vunpack.c.l.b16 %v1257
        %v1290 = vunpack.c.l.b16 %v1258
        %v1291 = vpack.c.b16 %v1276, %v1275
        %v1292 = vpack.c.b16 %v1278, %v1277
        %v1293 = vpack.c.b16 %v1280, %v1279
        %v1294 = vpack.c.b16 %v1282, %v1281
        %v1295 = vpack.c.b16 %v1284, %v1283
        %v1296 = vpack.c.b16 %v1286, %v1285
        %v1297 = vpack.c.b16 %v1288, %v1287
        %v1298 = vpack.c.b16 %v1290, %v1289
        %1307 = vmatprep.subr.bf16.mxu0 0
        %1308 = vmatpush1.bf16.msra.mxu0 %v1298
        %1309 = vmatprep.subr.bf16.mxu0 0
        %1310 = vmatpush1.bf16.msra.mxu0 %v1297
        %1311 = vmatprep.subr.bf16.mxu0 0
        %1312 = vmatpush1.bf16.msra.mxu0 %v1296
        %1313 = vmatprep.subr.bf16.mxu0 0
        %1314 = vmatpush1.bf16.msra.mxu0 %v1295
        %1315 = vmatprep.subr.bf16.mxu0 0
        %1316 = vmatpush1.bf16.msra.mxu0 %v1294
        %1317 = vmatprep.subr.bf16.mxu0 0
        %1318 = vmatpush1.bf16.msra.mxu0 %v1293
        %1319 = vmatprep.subr.bf16.mxu0 0
        %1320 = vmatpush1.bf16.msra.mxu0 %v1292
        %1321 = vmatprep.subr.bf16.mxu0 0
        %1322 = vmatpush1.bf16.msra.mxu0 %v1291
        %1323 = vmatprep.subr.bf16.mxu0 0
        %1324 = vmatpush2.bf16.msra.mxu0 0
        %1325 = vmatprep.subr.bf16.mxu0 0
        %1326 = vmatpush2.bf16.msra.mxu0 0
        %1327 = vmatprep.subr.bf16.mxu0 0
        %1328 = vmatpush2.bf16.msra.mxu0 0
        %1329 = vmatprep.subr.bf16.mxu0 0
        %1330 = vmatpush2.bf16.msra.mxu0 0
        %1331 = vmatprep.subr.bf16.mxu0 0
        %1332 = vmatpush2.bf16.msra.mxu0 0
        %1333 = vmatprep.subr.bf16.mxu0 0
        %1334 = vmatpush2.bf16.msra.mxu0 0
        %1335 = vmatprep.subr.bf16.mxu0 0
        %1336 = vmatpush2.bf16.msra.mxu0 0
        %1337 = vmatprep.subr.bf16.mxu0 0
        %1338 = vmatpush2.bf16.msra.mxu0 0
        %1339 = vmatprep.mubr.bf16.mxu0 0
        %1340 = vmatmul.mubr.bf16.gmra.mxu0 %v1235
        %v1341 = vpop.f32.mrf.mxu0
        %v1342 = vadd.f32 0.0, %v1341
        %v1343 = vpop.f32.mrf.mxu0
        %v1344 = vpop.f32.mrf.mxu0
        %v1345 = vadd.f32 0.0, %v1344
        %v1346 = vpop.f32.mrf.mxu0
        %1347 = vmatprep.mubr.bf16.mxu0 0
        %1348 = vmatmul.mubr.bf16.gmra.mxu0 %v1236
        %v1349 = vpop.f32.mrf.mxu0
        %v1350 = vadd.f32 0.0, %v1349
        %v1351 = vpop.f32.mrf.mxu0
        %v1352 = vpop.f32.mrf.mxu0
        %v1353 = vadd.f32 0.0, %v1352
        %v1354 = vpop.f32.mrf.mxu0
        %1355 = vmatprep.mubr.bf16.mxu0 0
        %1356 = vmatmul.mubr.bf16.gmra.mxu0 %v1237
        %v1357 = vpop.f32.mrf.mxu0
        %v1358 = vadd.f32 0.0, %v1357
        %v1359 = vpop.f32.mrf.mxu0
        %v1360 = vpop.f32.mrf.mxu0
        %v1361 = vadd.f32 0.0, %v1360
        %v1362 = vpop.f32.mrf.mxu0
        %1363 = vmatprep.mubr.bf16.mxu0 0
        %1364 = vmatmul.mubr.bf16.gmra.mxu0 %v1238
        %v1365 = vpop.f32.mrf.mxu0
        %v1366 = vadd.f32 0.0, %v1365
        %v1367 = vpop.f32.mrf.mxu0
        %v1368 = vpop.f32.mrf.mxu0
        %v1369 = vadd.f32 0.0, %v1368
        %v1370 = vpop.f32.mrf.mxu0
        %1371 = vmatprep.mubr.bf16.mxu0 0
        %1372 = vmatmul.mubr.bf16.gmra.mxu0 %v1239
        %v1373 = vpop.f32.mrf.mxu0
        %v1374 = vadd.f32 0.0, %v1373
        %v1375 = vpop.f32.mrf.mxu0
        %v1376 = vpop.f32.mrf.mxu0
        %v1377 = vadd.f32 0.0, %v1376
        %v1378 = vpop.f32.mrf.mxu0
        %1379 = vmatprep.mubr.bf16.mxu0 0
        %1380 = vmatmul.mubr.bf16.gmra.mxu0 %v1240
        %v1381 = vpop.f32.mrf.mxu0
        %v1382 = vadd.f32 0.0, %v1381
        %v1383 = vpop.f32.mrf.mxu0
        %v1384 = vpop.f32.mrf.mxu0
        %v1385 = vadd.f32 0.0, %v1384
        %v1386 = vpop.f32.mrf.mxu0
        %1387 = vmatprep.mubr.bf16.mxu0 0
        %1388 = vmatmul.mubr.bf16.gmra.mxu0 %v1241
        %v1389 = vpop.f32.mrf.mxu0
        %v1390 = vadd.f32 0.0, %v1389
        %v1391 = vpop.f32.mrf.mxu0
        %v1392 = vpop.f32.mrf.mxu0
        %v1393 = vadd.f32 0.0, %v1392
        %v1394 = vpop.f32.mrf.mxu0
        %1395 = vmatprep.mubr.bf16.mxu0 0
        %1396 = vmatmul.mubr.bf16.gmra.mxu0 %v1242
        %v1397 = vpop.f32.mrf.mxu0
        %v1398 = vadd.f32 0.0, %v1397
        %v1399 = vpop.f32.mrf.mxu0
        %v1400 = vpop.f32.mrf.mxu0
        %v1401 = vadd.f32 0.0, %v1400
        %v1402 = vpop.f32.mrf.mxu0
        %1403 = vdwg.mxu0
        %s1404 = scalar_lea.vmem [#allocation7], 64
        %v1405 = vld [vmem:[%s1404] sm:$0xf]
        %v1406 = vld [vmem:[%s1404 + $0x4] sm:$0xf]
        %v1407 = vld [vmem:[%s1404 + $0x8] sm:$0xf]
        %v1408 = vld [vmem:[%s1404 + $0xc] sm:$0xf]
        %v1409 = vld [vmem:[%s1404 + $0x10] sm:$0xf]
        %v1410 = vld [vmem:[%s1404 + $0x14] sm:$0xf]
        %v1411 = vld [vmem:[%s1404 + $0x18] sm:$0xf]
        %v1412 = vld [vmem:[%s1404 + $0x1c] sm:$0xf]
        %v1413 = vld [vmem:[%s1404 + $0x20] sm:$0xf]
        %v1414 = vld [vmem:[%s1404 + $0x24] sm:$0xf]
        %v1415 = vld [vmem:[%s1404 + $0x28] sm:$0xf]
        %v1416 = vld [vmem:[%s1404 + $0x2c] sm:$0xf]
        %v1417 = vld [vmem:[%s1404 + $0x30] sm:$0xf]
        %v1418 = vld [vmem:[%s1404 + $0x34] sm:$0xf]
        %v1419 = vld [vmem:[%s1404 + $0x38] sm:$0xf]
        %v1420 = vld [vmem:[%s1404 + $0x3c] sm:$0xf]
        %s1421 = scalar_lea.vmem [#allocation7], 128
        %v1422 = vld [vmem:[%s1421] sm:$0xf]
        %v1423 = vld [vmem:[%s1421 + $0x4] sm:$0xf]
        %v1424 = vld [vmem:[%s1421 + $0x8] sm:$0xf]
        %v1425 = vld [vmem:[%s1421 + $0xc] sm:$0xf]
        %v1426 = vld [vmem:[%s1421 + $0x10] sm:$0xf]
        %v1427 = vld [vmem:[%s1421 + $0x14] sm:$0xf]
        %v1428 = vld [vmem:[%s1421 + $0x18] sm:$0xf]
        %v1429 = vld [vmem:[%s1421 + $0x1c] sm:$0xf]
        %v1430 = vld [vmem:[%s1421 + $0x20] sm:$0xf]
        %v1431 = vld [vmem:[%s1421 + $0x24] sm:$0xf]
        %v1432 = vld [vmem:[%s1421 + $0x28] sm:$0xf]
        %v1433 = vld [vmem:[%s1421 + $0x2c] sm:$0xf]
        %v1434 = vld [vmem:[%s1421 + $0x30] sm:$0xf]
        %v1435 = vld [vmem:[%s1421 + $0x34] sm:$0xf]
        %v1436 = vld [vmem:[%s1421 + $0x38] sm:$0xf]
        %v1437 = vld [vmem:[%s1421 + $0x3c] sm:$0xf]
        %v1454 = vunpack.c.l.b16 %v1422
        %v1455 = vunpack.c.l.b16 %v1423
        %v1456 = vunpack.c.l.b16 %v1424
        %v1457 = vunpack.c.l.b16 %v1425
        %v1458 = vunpack.c.l.b16 %v1426
        %v1459 = vunpack.c.l.b16 %v1427
        %v1460 = vunpack.c.l.b16 %v1428
        %v1461 = vunpack.c.l.b16 %v1429
        %v1462 = vunpack.c.l.b16 %v1430
        %v1463 = vunpack.c.l.b16 %v1431
        %v1464 = vunpack.c.l.b16 %v1432
        %v1465 = vunpack.c.l.b16 %v1433
        %v1466 = vunpack.c.l.b16 %v1434
        %v1467 = vunpack.c.l.b16 %v1435
        %v1468 = vunpack.c.l.b16 %v1436
        %v1469 = vunpack.c.l.b16 %v1437
        %v1470 = vpack.c.b16 %v1455, %v1454
        %v1471 = vpack.c.b16 %v1457, %v1456
        %v1472 = vpack.c.b16 %v1459, %v1458
        %v1473 = vpack.c.b16 %v1461, %v1460
        %v1474 = vpack.c.b16 %v1463, %v1462
        %v1475 = vpack.c.b16 %v1465, %v1464
        %v1476 = vpack.c.b16 %v1467, %v1466
        %v1477 = vpack.c.b16 %v1469, %v1468
        %1486 = vmatprep.subr.bf16.mxu0 0
        %1487 = vmatpush1.bf16.msra.mxu0 %v1477
        %1488 = vmatprep.subr.bf16.mxu0 0
        %1489 = vmatpush1.bf16.msra.mxu0 %v1476
        %1490 = vmatprep.subr.bf16.mxu0 0
        %1491 = vmatpush1.bf16.msra.mxu0 %v1475
        %1492 = vmatprep.subr.bf16.mxu0 0
        %1493 = vmatpush1.bf16.msra.mxu0 %v1474
        %1494 = vmatprep.subr.bf16.mxu0 0
        %1495 = vmatpush1.bf16.msra.mxu0 %v1473
        %1496 = vmatprep.subr.bf16.mxu0 0
        %1497 = vmatpush1.bf16.msra.mxu0 %v1472
        %1498 = vmatprep.subr.bf16.mxu0 0
        %1499 = vmatpush1.bf16.msra.mxu0 %v1471
        %1500 = vmatprep.subr.bf16.mxu0 0
        %1501 = vmatpush1.bf16.msra.mxu0 %v1470
        %1502 = vmatprep.subr.bf16.mxu0 0
        %1503 = vmatpush2.bf16.msra.mxu0 0
        %1504 = vmatprep.subr.bf16.mxu0 0
        %1505 = vmatpush2.bf16.msra.mxu0 0
        %1506 = vmatprep.subr.bf16.mxu0 0
        %1507 = vmatpush2.bf16.msra.mxu0 0
        %1508 = vmatprep.subr.bf16.mxu0 0
        %1509 = vmatpush2.bf16.msra.mxu0 0
        %1510 = vmatprep.subr.bf16.mxu0 0
        %1511 = vmatpush2.bf16.msra.mxu0 0
        %1512 = vmatprep.subr.bf16.mxu0 0
        %1513 = vmatpush2.bf16.msra.mxu0 0
        %1514 = vmatprep.subr.bf16.mxu0 0
        %1515 = vmatpush2.bf16.msra.mxu0 0
        %1516 = vmatprep.subr.bf16.mxu0 0
        %1517 = vmatpush2.bf16.msra.mxu0 0
        %1518 = vmatprep.mubr.bf16.mxu0 0
        %1519 = vmatmul.mubr.bf16.gmra.mxu0 %v1235
        %v1520 = vpop.f32.mrf.mxu0
        %v1521 = vadd.f32 0.0, %v1520
        %v1522 = vpop.f32.mrf.mxu0
        %v1523 = vpop.f32.mrf.mxu0
        %v1524 = vadd.f32 0.0, %v1523
        %v1525 = vpop.f32.mrf.mxu0
        %1526 = vmatprep.mubr.bf16.mxu0 0
        %1527 = vmatmul.mubr.bf16.gmra.mxu0 %v1236
        %v1528 = vpop.f32.mrf.mxu0
        %v1529 = vadd.f32 0.0, %v1528
        %v1530 = vpop.f32.mrf.mxu0
        %v1531 = vpop.f32.mrf.mxu0
        %v1532 = vadd.f32 0.0, %v1531
        %v1533 = vpop.f32.mrf.mxu0
        %1534 = vmatprep.mubr.bf16.mxu0 0
        %1535 = vmatmul.mubr.bf16.gmra.mxu0 %v1237
        %v1536 = vpop.f32.mrf.mxu0
        %v1537 = vadd.f32 0.0, %v1536
        %v1538 = vpop.f32.mrf.mxu0
        %v1539 = vpop.f32.mrf.mxu0
        %v1540 = vadd.f32 0.0, %v1539
        %v1541 = vpop.f32.mrf.mxu0
        %1542 = vmatprep.mubr.bf16.mxu0 0
        %1543 = vmatmul.mubr.bf16.gmra.mxu0 %v1238
        %v1544 = vpop.f32.mrf.mxu0
        %v1545 = vadd.f32 0.0, %v1544
        %v1546 = vpop.f32.mrf.mxu0
        %v1547 = vpop.f32.mrf.mxu0
        %v1548 = vadd.f32 0.0, %v1547
        %v1549 = vpop.f32.mrf.mxu0
        %1550 = vmatprep.mubr.bf16.mxu0 0
        %1551 = vmatmul.mubr.bf16.gmra.mxu0 %v1239
        %v1552 = vpop.f32.mrf.mxu0
        %v1553 = vadd.f32 0.0, %v1552
        %v1554 = vpop.f32.mrf.mxu0
        %v1555 = vpop.f32.mrf.mxu0
        %v1556 = vadd.f32 0.0, %v1555
        %v1557 = vpop.f32.mrf.mxu0
        %1558 = vmatprep.mubr.bf16.mxu0 0
        %1559 = vmatmul.mubr.bf16.gmra.mxu0 %v1240
        %v1560 = vpop.f32.mrf.mxu0
        %v1561 = vadd.f32 0.0, %v1560
        %v1562 = vpop.f32.mrf.mxu0
        %v1563 = vpop.f32.mrf.mxu0
        %v1564 = vadd.f32 0.0, %v1563
        %v1565 = vpop.f32.mrf.mxu0
        %1566 = vmatprep.mubr.bf16.mxu0 0
        %1567 = vmatmul.mubr.bf16.gmra.mxu0 %v1241
        %v1568 = vpop.f32.mrf.mxu0
        %v1569 = vadd.f32 0.0, %v1568
        %v1570 = vpop.f32.mrf.mxu0
        %v1571 = vpop.f32.mrf.mxu0
        %v1572 = vadd.f32 0.0, %v1571
        %v1573 = vpop.f32.mrf.mxu0
        %1574 = vmatprep.mubr.bf16.mxu0 0
        %1575 = vmatmul.mubr.bf16.gmra.mxu0 %v1242
        %v1576 = vpop.f32.mrf.mxu0
        %v1577 = vadd.f32 0.0, %v1576
        %v1578 = vpop.f32.mrf.mxu0
        %v1579 = vpop.f32.mrf.mxu0
        %v1580 = vadd.f32 0.0, %v1579
        %v1581 = vpop.f32.mrf.mxu0
        %1582 = vdwg.mxu0
        %v1583 = vrot.slane %v1342, 7
        %v1584 = vrot.slane %v1345, 7
        %v1585 = vrot.slane %v1350, 7
        %v1586 = vrot.slane %v1353, 7
        %v1587 = vrot.slane %v1358, 7
        %v1588 = vrot.slane %v1361, 7
        %v1589 = vrot.slane %v1366, 7
        %v1590 = vrot.slane %v1369, 7
        %v1591 = vrot.slane %v1374, 7
        %v1592 = vrot.slane %v1377, 7
        %v1593 = vrot.slane %v1382, 7
        %v1594 = vrot.slane %v1385, 7
        %v1595 = vrot.slane %v1390, 7
        %v1596 = vrot.slane %v1393, 7
        %v1597 = vrot.slane %v1398, 7
        %v1598 = vrot.slane %v1401, 7
        %v1599 = vsel %vm953, %v1597, %v1598
        %v1600 = vsel %vm953, %v1596, %v1597
        %v1601 = vsel %vm953, %v1595, %v1596
        %v1602 = vsel %vm953, %v1594, %v1595
        %v1603 = vsel %vm953, %v1593, %v1594
        %v1604 = vsel %vm953, %v1592, %v1593
        %v1605 = vsel %vm953, %v1591, %v1592
        %v1606 = vsel %vm953, %v1590, %v1591
        %v1607 = vsel %vm953, %v1589, %v1590
        %v1608 = vsel %vm953, %v1588, %v1589
        %v1609 = vsel %vm953, %v1587, %v1588
        %v1610 = vsel %vm953, %v1586, %v1587
        %v1611 = vsel %vm953, %v1585, %v1586
        %v1612 = vsel %vm953, %v1584, %v1585
        %v1613 = vsel %vm953, %v1583, %v1584
        %v1614 = vsel %vm953, %v1598, %v1583
        %v1615 = vsel %vm517, %v1614, 0.0
        %v1616 = vsel %vm518, %v1613, 0.0
        %v1617 = vsel %vm519, %v1612, 0.0
        %v1618 = vsel %vm520, %v1611, 0.0
        %v1619 = vsel %vm521, %v1610, 0.0
        %v1620 = vsel %vm522, %v1609, 0.0
        %v1621 = vsel %vm523, %v1608, 0.0
        %v1622 = vsel %vm524, %v1607, 0.0
        %v1623 = vsel %vm525, %v1606, 0.0
        %v1624 = vsel %vm526, %v1605, 0.0
        %v1625 = vsel %vm527, %v1604, 0.0
        %v1626 = vsel %vm528, %v1603, 0.0
        %v1627 = vsel %vm529, %v1602, 0.0
        %v1628 = vsel %vm530, %v1601, 0.0
        %v1629 = vsel %vm531, %v1600, 0.0
        %v1630 = vsel %vm532, %v1599, 0.0
        %v1647 = vunpack.c.l.b16 %v1405
        %v1648 = vunpack.c.l.b16 %v1406
        %v1649 = vunpack.c.l.b16 %v1407
        %v1650 = vunpack.c.l.b16 %v1408
        %v1651 = vunpack.c.l.b16 %v1409
        %v1652 = vunpack.c.l.b16 %v1410
        %v1653 = vunpack.c.l.b16 %v1411
        %v1654 = vunpack.c.l.b16 %v1412
        %v1655 = vunpack.c.l.b16 %v1413
        %v1656 = vunpack.c.l.b16 %v1414
        %v1657 = vunpack.c.l.b16 %v1415
        %v1658 = vunpack.c.l.b16 %v1416
        %v1659 = vunpack.c.l.b16 %v1417
        %v1660 = vunpack.c.l.b16 %v1418
        %v1661 = vunpack.c.l.b16 %v1419
        %v1662 = vunpack.c.l.b16 %v1420
        %v1663 = vpack.c.b16 %v1648, %v1647
        %v1664 = vpack.c.b16 %v1650, %v1649
        %v1665 = vpack.c.b16 %v1652, %v1651
        %v1666 = vpack.c.b16 %v1654, %v1653
        %v1667 = vpack.c.b16 %v1656, %v1655
        %v1668 = vpack.c.b16 %v1658, %v1657
        %v1669 = vpack.c.b16 %v1660, %v1659
        %v1670 = vpack.c.b16 %v1662, %v1661
        %1679 = vmatprep.subr.bf16.mxu0 0
        %1680 = vmatpush1.bf16.msra.mxu0 %v1670
        %1681 = vmatprep.subr.bf16.mxu0 0
        %1682 = vmatpush1.bf16.msra.mxu0 %v1669
        %1683 = vmatprep.subr.bf16.mxu0 0
        %1684 = vmatpush1.bf16.msra.mxu0 %v1668
        %1685 = vmatprep.subr.bf16.mxu0 0
        %1686 = vmatpush1.bf16.msra.mxu0 %v1667
        %1687 = vmatprep.subr.bf16.mxu0 0
        %1688 = vmatpush1.bf16.msra.mxu0 %v1666
        %1689 = vmatprep.subr.bf16.mxu0 0
        %1690 = vmatpush1.bf16.msra.mxu0 %v1665
        %1691 = vmatprep.subr.bf16.mxu0 0
        %1692 = vmatpush1.bf16.msra.mxu0 %v1664
        %1693 = vmatprep.subr.bf16.mxu0 0
        %1694 = vmatpush1.bf16.msra.mxu0 %v1663
        %1695 = vmatprep.subr.bf16.mxu0 0
        %1696 = vmatpush2.bf16.msra.mxu0 0
        %1697 = vmatprep.subr.bf16.mxu0 0
        %1698 = vmatpush2.bf16.msra.mxu0 0
        %1699 = vmatprep.subr.bf16.mxu0 0
        %1700 = vmatpush2.bf16.msra.mxu0 0
        %1701 = vmatprep.subr.bf16.mxu0 0
        %1702 = vmatpush2.bf16.msra.mxu0 0
        %1703 = vmatprep.subr.bf16.mxu0 0
        %1704 = vmatpush2.bf16.msra.mxu0 0
        %1705 = vmatprep.subr.bf16.mxu0 0
        %1706 = vmatpush2.bf16.msra.mxu0 0
        %1707 = vmatprep.subr.bf16.mxu0 0
        %1708 = vmatpush2.bf16.msra.mxu0 0
        %1709 = vmatprep.subr.bf16.mxu0 0
        %1710 = vmatpush2.bf16.msra.mxu0 0
        %1711 = vmatprep.mubr.bf16.mxu0 0
        %1712 = vmatmul.mubr.bf16.gmra.mxu0 %v1235
        %v1713 = vpop.f32.mrf.mxu0
        %v1714 = vadd.f32 %v1615, %v1713
        %v1715 = vpop.f32.mrf.mxu0
        %v1716 = vpop.f32.mrf.mxu0
        %v1717 = vadd.f32 %v1616, %v1716
        %v1718 = vpop.f32.mrf.mxu0
        %1719 = vmatprep.mubr.bf16.mxu0 0
        %1720 = vmatmul.mubr.bf16.gmra.mxu0 %v1236
        %v1721 = vpop.f32.mrf.mxu0
        %v1722 = vadd.f32 %v1617, %v1721
        %v1723 = vpop.f32.mrf.mxu0
        %v1724 = vpop.f32.mrf.mxu0
        %v1725 = vadd.f32 %v1618, %v1724
        %v1726 = vpop.f32.mrf.mxu0
        %1727 = vmatprep.mubr.bf16.mxu0 0
        %1728 = vmatmul.mubr.bf16.gmra.mxu0 %v1237
        %v1729 = vpop.f32.mrf.mxu0
        %v1730 = vadd.f32 %v1619, %v1729
        %v1731 = vpop.f32.mrf.mxu0
        %v1732 = vpop.f32.mrf.mxu0
        %v1733 = vadd.f32 %v1620, %v1732
        %v1734 = vpop.f32.mrf.mxu0
        %1735 = vmatprep.mubr.bf16.mxu0 0
        %1736 = vmatmul.mubr.bf16.gmra.mxu0 %v1238
        %v1737 = vpop.f32.mrf.mxu0
        %v1738 = vadd.f32 %v1621, %v1737
        %v1739 = vpop.f32.mrf.mxu0
        %v1740 = vpop.f32.mrf.mxu0
        %v1741 = vadd.f32 %v1622, %v1740
        %v1742 = vpop.f32.mrf.mxu0
        %1743 = vmatprep.mubr.bf16.mxu0 0
        %1744 = vmatmul.mubr.bf16.gmra.mxu0 %v1239
        %v1745 = vpop.f32.mrf.mxu0
        %v1746 = vadd.f32 %v1623, %v1745
        %v1747 = vpop.f32.mrf.mxu0
        %v1748 = vpop.f32.mrf.mxu0
        %v1749 = vadd.f32 %v1624, %v1748
        %v1750 = vpop.f32.mrf.mxu0
        %1751 = vmatprep.mubr.bf16.mxu0 0
        %1752 = vmatmul.mubr.bf16.gmra.mxu0 %v1240
        %v1753 = vpop.f32.mrf.mxu0
        %v1754 = vadd.f32 %v1625, %v1753
        %v1755 = vpop.f32.mrf.mxu0
        %v1756 = vpop.f32.mrf.mxu0
        %v1757 = vadd.f32 %v1626, %v1756
        %v1758 = vpop.f32.mrf.mxu0
        %1759 = vmatprep.mubr.bf16.mxu0 0
        %1760 = vmatmul.mubr.bf16.gmra.mxu0 %v1241
        %v1761 = vpop.f32.mrf.mxu0
        %v1762 = vadd.f32 %v1627, %v1761
        %v1763 = vpop.f32.mrf.mxu0
        %v1764 = vpop.f32.mrf.mxu0
        %v1765 = vadd.f32 %v1628, %v1764
        %v1766 = vpop.f32.mrf.mxu0
        %1767 = vmatprep.mubr.bf16.mxu0 0
        %1768 = vmatmul.mubr.bf16.gmra.mxu0 %v1242
        %v1769 = vpop.f32.mrf.mxu0
        %v1770 = vadd.f32 %v1629, %v1769
        %v1771 = vpop.f32.mrf.mxu0
        %v1772 = vpop.f32.mrf.mxu0
        %v1773 = vadd.f32 %v1630, %v1772
        %v1774 = vpop.f32.mrf.mxu0
        %1775 = vdwg.mxu0
        %v1776 = vrot.slane %v1521, 1
        %v1777 = vrot.slane %v1524, 1
        %v1778 = vrot.slane %v1529, 1
        %v1779 = vrot.slane %v1532, 1
        %v1780 = vrot.slane %v1537, 1
        %v1781 = vrot.slane %v1540, 1
        %v1782 = vrot.slane %v1545, 1
        %v1783 = vrot.slane %v1548, 1
        %v1784 = vrot.slane %v1553, 1
        %v1785 = vrot.slane %v1556, 1
        %v1786 = vrot.slane %v1561, 1
        %v1787 = vrot.slane %v1564, 1
        %v1788 = vrot.slane %v1569, 1
        %v1789 = vrot.slane %v1572, 1
        %v1790 = vrot.slane %v1577, 1
        %v1791 = vrot.slane %v1580, 1
        %v1792 = vsel %vm1147, %v1790, %v1791
        %v1793 = vsel %vm1147, %v1789, %v1790
        %v1794 = vsel %vm1147, %v1788, %v1789
        %v1795 = vsel %vm1147, %v1787, %v1788
        %v1796 = vsel %vm1147, %v1786, %v1787
        %v1797 = vsel %vm1147, %v1785, %v1786
        %v1798 = vsel %vm1147, %v1784, %v1785
        %v1799 = vsel %vm1147, %v1783, %v1784
        %v1800 = vsel %vm1147, %v1782, %v1783
        %v1801 = vsel %vm1147, %v1781, %v1782
        %v1802 = vsel %vm1147, %v1780, %v1781
        %v1803 = vsel %vm1147, %v1779, %v1780
        %v1804 = vsel %vm1147, %v1778, %v1779
        %v1805 = vsel %vm1147, %v1777, %v1778
        %v1806 = vsel %vm1147, %v1776, %v1777
        %v1807 = vsel %vm1147, %v1791, %v1776
        %v1808 = vsel %vm533, %v1806, 0.0
        %v1809 = vsel %vm534, %v1805, 0.0
        %v1810 = vsel %vm535, %v1804, 0.0
        %v1811 = vsel %vm536, %v1803, 0.0
        %v1812 = vsel %vm537, %v1802, 0.0
        %v1813 = vsel %vm538, %v1801, 0.0
        %v1814 = vsel %vm539, %v1800, 0.0
        %v1815 = vsel %vm540, %v1799, 0.0
        %v1816 = vsel %vm541, %v1798, 0.0
        %v1817 = vsel %vm542, %v1797, 0.0
        %v1818 = vsel %vm543, %v1796, 0.0
        %v1819 = vsel %vm544, %v1795, 0.0
        %v1820 = vsel %vm545, %v1794, 0.0
        %v1821 = vsel %vm546, %v1793, 0.0
        %v1822 = vsel %vm547, %v1792, 0.0
        %v1823 = vsel %vm548, %v1807, 0.0
        %v1824 = vadd.f32 %v1714, %v1808
        %v1825 = vadd.f32 %v1717, %v1809
        %v1826 = vadd.f32 %v1722, %v1810
        %v1827 = vadd.f32 %v1725, %v1811
        %v1828 = vadd.f32 %v1730, %v1812
        %v1829 = vadd.f32 %v1733, %v1813
        %v1830 = vadd.f32 %v1738, %v1814
        %v1831 = vadd.f32 %v1741, %v1815
        %v1832 = vadd.f32 %v1746, %v1816
        %v1833 = vadd.f32 %v1749, %v1817
        %v1834 = vadd.f32 %v1754, %v1818
        %v1835 = vadd.f32 %v1757, %v1819
        %v1836 = vadd.f32 %v1762, %v1820
        %v1837 = vadd.f32 %v1765, %v1821
        %v1838 = vadd.f32 %v1770, %v1822
        %v1839 = vadd.f32 %v1773, %v1823
        %v1840 = vld [vmem:[%s4] sm:$0x1]
        %v1842 = vlaneseq
        %v1843 = vshrl.u32 %v1842, 7
        %v1844 = vsub.s32 0, %v1843
        %v1845 = vrot.slane %v1840, %v1844
        %v1847 = vadd.f32 %v1824, %v1845
        %v1848 = vadd.f32 %v1825, %v1845
        %v1849 = vadd.f32 %v1826, %v1845
        %v1850 = vadd.f32 %v1827, %v1845
        %v1851 = vadd.f32 %v1828, %v1845
        %v1852 = vadd.f32 %v1829, %v1845
        %v1853 = vadd.f32 %v1830, %v1845
        %v1854 = vadd.f32 %v1831, %v1845
        %v1855 = vadd.f32 %v1832, %v1845
        %v1856 = vadd.f32 %v1833, %v1845
        %v1857 = vadd.f32 %v1834, %v1845
        %v1858 = vadd.f32 %v1835, %v1845
        %v1859 = vadd.f32 %v1836, %v1845
        %v1860 = vadd.f32 %v1837, %v1845
        %v1861 = vadd.f32 %v1838, %v1845
        %v1862 = vadd.f32 %v1839, %v1845
        %v1863 = vadd.f32 %v1847, %v292
        %v1864 = vadd.f32 %v1848, %v293
        %v1865 = vadd.f32 %v1849, %v294
        %v1866 = vadd.f32 %v1850, %v295
        %v1867 = vadd.f32 %v1851, %v296
        %v1868 = vadd.f32 %v1852, %v297
        %v1869 = vadd.f32 %v1853, %v298
        %v1870 = vadd.f32 %v1854, %v299
        %v1871 = vadd.f32 %v1855, %v300
        %v1872 = vadd.f32 %v1856, %v301
        %v1873 = vadd.f32 %v1857, %v302
        %v1874 = vadd.f32 %v1858, %v303
        %v1875 = vadd.f32 %v1859, %v304
        %v1876 = vadd.f32 %v1860, %v305
        %v1877 = vadd.f32 %v1861, %v306
        %v1878 = vadd.f32 %v1862, %v307
        %v1879 = vmax.f32 %v1863, 0.0
        %v1880 = vmax.f32 %v1864, 0.0
        %v1881 = vmax.f32 %v1865, 0.0
        %v1882 = vmax.f32 %v1866, 0.0
        %v1883 = vmax.f32 %v1867, 0.0
        %v1884 = vmax.f32 %v1868, 0.0
        %v1885 = vmax.f32 %v1869, 0.0
        %v1886 = vmax.f32 %v1870, 0.0
        %v1887 = vmax.f32 %v1871, 0.0
        %v1888 = vmax.f32 %v1872, 0.0
        %v1889 = vmax.f32 %v1873, 0.0
        %v1890 = vmax.f32 %v1874, 0.0
        %v1891 = vmax.f32 %v1875, 0.0
        %v1892 = vmax.f32 %v1876, 0.0
        %v1893 = vmax.f32 %v1877, 0.0
        %v1894 = vmax.f32 %v1878, 0.0
        %1895 = vst [vmem:[%s272] sm:$0xff] %v1879
        %1896 = vst [vmem:[%s272 + $0x8] sm:$0xff] %v1880
        %1897 = vst [vmem:[%s272 + $0x10] sm:$0xff] %v1881
        %1898 = vst [vmem:[%s272 + $0x18] sm:$0xff] %v1882
        %1899 = vst [vmem:[%s272 + $0x20] sm:$0xff] %v1883
        %1900 = vst [vmem:[%s272 + $0x28] sm:$0xff] %v1884
        %1901 = vst [vmem:[%s272 + $0x30] sm:$0xff] %v1885
        %1902 = vst [vmem:[%s272 + $0x38] sm:$0xff] %v1886
        %1903 = vst [vmem:[%s272 + $0x40] sm:$0xff] %v1887
        %1904 = vst [vmem:[%s272 + $0x48] sm:$0xff] %v1888
        %1905 = vst [vmem:[%s272 + $0x50] sm:$0xff] %v1889
        %1906 = vst [vmem:[%s272 + $0x58] sm:$0xff] %v1890
        %1907 = vst [vmem:[%s272 + $0x60] sm:$0xff] %v1891
        %1908 = vst [vmem:[%s272 + $0x68] sm:$0xff] %v1892
        %1909 = vst [vmem:[%s272 + $0x70] sm:$0xff] %v1893
        %1910 = vst [vmem:[%s272 + $0x78] sm:$0xff] %v1894
        %s1911 = sand.u32 %s141, 1
        %s1912 = scalar_lea.sflag [#allocation4], %s1911
        %s1913 = sand.u32 %s141, 1
        %s1914 = smul.addr %s1913, 128
        %s1915 = scalar_lea.vmem [#allocation8], %s1914
        // Predicated region
        $region53: #{_lambda_.1} parent=39 // pred_check
          %p1916 = pneg %p151
        $region54: #{_lambda_.1} parent=39 // pred_check_branch
          %1918 = sbr.rel (%p1916) target = $region56
        $region55: #{_lambda_.1} parent=39 // pred_region
          %s1919 = smul.u32 8, %s23
          %s1921 = ssub.s32 2048, 2048
          %1922 = vsyncadd %s1912, %s1921
          %s1923 = smul.addr %s1919, 2
          %s1924 = smul.addr %s1923, 128
          %s1925 = scalar_lea.hbm %s5, %s1924
          %s1926 = sshll.u32 %s1915, 4
          %s1927 = int_to_ptr.vmem [resolvable:$true] %s1926
          %1932 = dma.vmem_to_hbm [thread:$0]  %s1927, 2048, %s1925, %s1912, 128, 128, 8
        $region56: #{_lambda_.1} parent=39 // pred_fallthru
          _
      $region40: #{_lambda_.1} parent=5 // pred_fallthru
        _
      %p1933 = scmp.le.s32.totalorder 2, %s18
      // Predicated region
      $region57: #{_lambda_.1} parent=5 // pred_check
        %p1934 = pneg %p1933
      $region58: #{_lambda_.1} parent=5 // pred_check_branch
        %1936 = sbr.rel (%p1934) target = $region60
      $region59: #{_lambda_.1} parent=5 // pred_region
        %s1937 = ssub.s32 %s18, 2
        // Predicated region
        $region61: #{_lambda_.1} parent=59 // pred_check
          %p1938 = pneg %p157
        $region62: #{_lambda_.1} parent=59 // pred_check_branch
          %1940 = sbr.rel (%p1938) target = $region64
        $region63: #{_lambda_.1} parent=59 // pred_region
          %s1941 = sand.u32 %s142, 1
          %s1942 = scalar_lea.sflag [#allocation4], %s1941
          %s1943 = sand.u32 %s142, 1
          %s1944 = smul.addr %s1943, 128
          %s1945 = scalar_lea.vmem [#allocation8], %s1944
          %1946 = dma.done %s1942, 2048
        $region64: #{_lambda_.1} parent=59 // pred_fallthru
          _
      $region60: #{_lambda_.1} parent=5 // pred_fallthru
        _
    $region6: #{_lambda_.1} parent=1 // loop_footer
      %s22 = sadd.s32 1, %s18
    $region7: #{_lambda_.1} parent=1 // loop_footer_branch
      %17 = sbr.rel target = $region3
    $region8: #{_lambda_.1} parent=1 // loop_exit
      _
    %1947 = vsyncpa [#allocation3], 1
    %s1948 = scalar_lea.sflag [#allocation3], 1
    %1949 = vsyncpa %s1948, 1
    %1950 = vsyncpa [#allocation6], 1
    %1951 = vsyncpa [#allocation4], 1
    %s1952 = scalar_lea.sflag [#allocation4], 1
    %1953 = vsyncpa %s1952, 1

</llo_original>
